<compile_context>
chip_gen: v7x
topology: tpu7x:2x2x1
jax: 0.10.0
libtpu: 0.0.40
codegen_flags: <defaults>
</compile_context>

<pallas_src>
import functools
import numpy as np
import jax
import jax.numpy as jnp
from jax.experimental import pallas as pl
from jax.experimental.pallas import tpu as pltpu


# ----------------------------------------------------------------------------
# Fused forward kernel: one grid step == one encoder layer.
# Layer 0 additionally does the input projection + positional encoding,
# the last layer additionally does last-token gather + output head.
# ----------------------------------------------------------------------------
def fused_layer_kernel(nhead, num_layers, B, S,
                       x_ref, pe_ref, wp_ref, bp_ref,
                       wqkv_ref, bqkv_ref, wo_ref, bo_ref,
                       g1_ref, be1_ref, w1_ref, b1_ref, w2_ref, b2_ref,
                       g2_ref, be2_ref, wh_ref, bh_ref,
                       o_ref,
                       y_scratch):
    bf16 = jnp.bfloat16
    f32 = jnp.float32
    l = pl.program_id(0)
    H = wp_ref.shape[1]
    dh = H // nhead
    BS = B * S

    def mm(a_bf16, w):  # bf16 MXU matmul, f32 accumulation
        return jnp.dot(a_bf16, w, preferred_element_type=f32)

    # ---- layer 0 only: input projection + positional encoding ----
    @pl.when(l == 0)
    def _():
        y0 = mm(x_ref[...], wp_ref[...]) + bp_ref[...]                    # (BS, H) f32
        y0 = (y0.reshape(B, S, H) + pe_ref[...][None]).reshape(BS, H)     # + pe (S,H)
        y_scratch[...] = y0

    x_l = y_scratch[...]                                                  # (BS, H) f32
    x_bf = x_l.astype(bf16)                                               # cast once

    # ---- fused QKV projection (1/sqrt(dh) folded into Q columns) ----
    qkv = mm(x_bf, wqkv_ref[...]) + bqkv_ref[...]                         # (BS, 3H) f32
    qkv_bf = qkv.astype(bf16)                                             # cast once

    # ---- multi-head attention (static head loop; batched over B per head) ----
    ctx_heads = []
    for h in range(nhead):
        q = qkv_bf[:, h * dh:(h + 1) * dh].reshape(B, S, dh)
        k = qkv_bf[:, H + h * dh:H + (h + 1) * dh].reshape(B, S, dh)
        v = qkv_bf[:, 2 * H + h * dh:2 * H + (h + 1) * dh].reshape(B, S, dh)

        s = jnp.einsum("bqd,bkd->bqk", q, k, preferred_element_type=f32)  # (B, S, S)
        s = s - jnp.max(s, axis=-1, keepdims=True)
        p = jnp.exp(s)
        p = p / jnp.sum(p, axis=-1, keepdims=True)                        # exact softmax
        ctx = jnp.einsum("bqk,bkd->bqd", p.astype(bf16), v,
                         preferred_element_type=f32)                      # (B, S, dh)
        ctx_heads.append(ctx.reshape(BS, dh))

    ctx = jnp.concatenate(ctx_heads, axis=-1)                             # (BS, H) f32
    attn = mm(ctx.astype(bf16), wo_ref[...]) + bo_ref[...]                # single Wo matmul

    # ---- residual + LayerNorm 1 (f32) ----
    r1 = x_l + attn
    mu1 = jnp.mean(r1, axis=-1, keepdims=True)
    var1 = jnp.mean((r1 - mu1) ** 2, axis=-1, keepdims=True)
    y1 = (r1 - mu1) * jax.lax.rsqrt(var1 + 1e-5) * g1_ref[...] + be1_ref[...]

    # ---- feed-forward H -> 4H -> H, ReLU ----
    h_mid = jnp.maximum(mm(y1.astype(bf16), w1_ref[...]) + b1_ref[...], 0.0)
    ff = mm(h_mid.astype(bf16), w2_ref[...]) + b2_ref[...]

    # ---- residual + LayerNorm 2 (f32) ----
    r2 = y1 + ff
    mu2 = jnp.mean(r2, axis=-1, keepdims=True)
    var2 = jnp.mean((r2 - mu2) ** 2, axis=-1, keepdims=True)
    y = (r2 - mu2) * jax.lax.rsqrt(var2 + 1e-5) * g2_ref[...] + be2_ref[...]

    y_scratch[...] = y                                                    # carry to next layer

    # ---- last layer only: last token + output head (lane reduce, no N=1 matmul) ----
    @pl.when(l == num_layers - 1)
    def _():
        x_last = y.reshape(B, S, H)[:, S - 1, :]                          # (B, H)
        out = jnp.sum(x_last * wh_ref[...], axis=-1, keepdims=True) + bh_ref[...]  # (B, 1)
        o_ref[...] = jnp.broadcast_to(out, o_ref.shape)                   # lane-dense store


# ----------------------------------------------------------------------------
# Wrapper
# ----------------------------------------------------------------------------
def transformer_forward(x, packed, nhead):
    B, S, Din = x.shape
    num_layers = packed["wqkv"].shape[0]
    H = packed["wp"].shape[1]
    BS = B * S

    x2 = x.reshape(BS, Din).astype(jnp.bfloat16)       # pre-cast: halves input DMA bytes

    def _resident(shape):
        nd = len(shape)
        return pl.BlockSpec(tuple(shape), lambda l, _nd=nd: (0,) * _nd)

    def _per_layer(tail):
        nd = len(tail)
        return pl.BlockSpec((None,) + tuple(tail), lambda l, _nd=nd: (l,) + (0,) * _nd)

    in_arrays = (x2, packed["pe"], packed["wp"], packed["bp"],
                 packed["wqkv"], packed["bqkv"], packed["wo"], packed["bo"],
                 packed["g1"], packed["be1"],
                 packed["w1"], packed["b1"], packed["w2"], packed["b2"],
                 packed["g2"], packed["be2"],
                 packed["wh"], packed["bh"])

    in_specs = [
        _resident(x2.shape), _resident(packed["pe"].shape),
        _resident(packed["wp"].shape), _resident(packed["bp"].shape),
        _per_layer(packed["wqkv"].shape[1:]), _per_layer(packed["bqkv"].shape[1:]),
        _per_layer(packed["wo"].shape[1:]), _per_layer(packed["bo"].shape[1:]),
        _per_layer(packed["g1"].shape[1:]), _per_layer(packed["be1"].shape[1:]),
        _per_layer(packed["w1"].shape[1:]), _per_layer(packed["b1"].shape[1:]),
        _per_layer(packed["w2"].shape[1:]), _per_layer(packed["b2"].shape[1:]),
        _per_layer(packed["g2"].shape[1:]), _per_layer(packed["be2"].shape[1:]),
        _resident(packed["wh"].shape), _resident(packed["bh"].shape),
    ]

    # VMEM budget: resident operands + double-buffered per-layer weights + activation
    # scratch + output, with headroom; keeps the budget explicit / tunable.
    def _nbytes(a):
        return int(np.prod(a.shape)) * a.dtype.itemsize

    resident_b = sum(_nbytes(a) for a in (x2, packed["pe"], packed["wp"], packed["bp"],
                                          packed["wh"], packed["bh"]))
    layer_b = sum(_nbytes(packed[k]) // num_layers for k in
                  ("wqkv", "bqkv", "wo", "bo", "g1", "be1",
                   "w1", "b1", "w2", "b2", "g2", "be2"))
    footprint = resident_b + 2 * layer_b + BS * H * 4 + B * 128 * 4
    vmem_limit = int(min(max(4 * footprint + (8 << 20), 32 << 20), 100 << 20))

    kernel = functools.partial(fused_layer_kernel, nhead, num_layers, B, S)
    out = pl.pallas_call(
        kernel,
        out_shape=jax.ShapeDtypeStruct((B, 128), jnp.float32),
        grid_spec=pltpu.PrefetchScalarGridSpec(
            num_scalar_prefetch=0,
            grid=(num_layers,),
            in_specs=in_specs,
            out_specs=pl.BlockSpec((B, 128), lambda l: (0, 0)),
            scratch_shapes=[pltpu.VMEM((BS, H), jnp.float32)],
        ),
        compiler_params=pltpu.CompilerParams(
            dimension_semantics=("arbitrary",),
            vmem_limit_bytes=vmem_limit,
        ),
    )(*in_arrays)
    return out[:, :1]                                   # (B, 1)


# ----------------------------------------------------------------------------
# Parameters (PyTorch-like layout) + packing into kernel layout
# ----------------------------------------------------------------------------
def init_params(key, input_dim, hidden_dim, nhead, num_layers, seq_len):
    H, F = hidden_dim, 4 * hidden_dim

    def lin(k, fan_in, fan_out):
        k1, k2 = jax.random.split(k)
        w = jax.random.normal(k1, (fan_in, fan_out), jnp.float32) / np.sqrt(fan_in)
        b = 0.01 * jax.random.normal(k2, (fan_out,), jnp.float32)
        return w, b

    key, kp = jax.random.split(key)
    wp, bp = lin(kp, input_dim, H)

    # sinusoidal positional encoding (same formula as the PyTorch module)
    position = np.arange(seq_len, dtype=np.float32)[:, None]
    div_term = np.exp(np.arange(0, H, 2, dtype=np.float32) * (-np.log(10000.0) / H))
    pe = np.zeros((seq_len, H), np.float32)
    pe[:, 0::2] = np.sin(position * div_term)
    pe[:, 1::2] = np.cos(position * div_term)

    layers = []
    for _ in range(num_layers):
        key, k1, k2, k3, k4, k5, k6 = jax.random.split(key, 7)
        wq, bq = lin(k1, H, H)
        wk, bk = lin(k2, H, H)
        wv, bv = lin(k3, H, H)
        wo, bo = lin(k4, H, H)
        w1, b1 = lin(k5, H, F)
        w2, b2 = lin(k6, F, H)
        layers.append(dict(
            wq=wq, bq=bq, wk=wk, bk=bk, wv=wv, bv=bv, wo=wo, bo=bo,
            g1=jnp.ones((H,), jnp.float32), be1=jnp.zeros((H,), jnp.float32),
            w1=w1, b1=b1, w2=w2, b2=b2,
            g2=jnp.ones((H,), jnp.float32), be2=jnp.zeros((H,), jnp.float32),
        ))

    key, kh = jax.random.split(key)
    wh, bh = lin(kh, H, 1)
    return dict(wp=wp, bp=bp, pe=jnp.asarray(pe), layers=layers, wh=wh, bh=bh)


def pack_params(params, nhead):
    """Pack PyTorch-like params into the fused-kernel layout.

    - Q/K/V fused to (L, H, 3H) with 1/sqrt(dh) folded into the Q part (weights+bias).
    - Out-projection kept full (L, H, H): the kernel does ONE Wo matmul per layer.
    - Matmul weights stored bf16 (halves weight DMA); biases / LN params / pe stay f32.
    - Head weight stored as a (1, H) f32 row vector (lane-reduce head in the kernel).
    """
    bf = jnp.bfloat16
    H = params["wp"].shape[1]
    dh = H // nhead
    scale = 1.0 / np.sqrt(dh)
    layers = params["layers"]

    wqkv = jnp.stack([jnp.concatenate([lp["wq"] * scale, lp["wk"], lp["wv"]], axis=1)
                      for lp in layers]).astype(bf)                        # (L, H, 3H)
    bqkv = jnp.stack([jnp.concatenate([lp["bq"] * scale, lp["bk"], lp["bv"]], axis=0)
                      for lp in layers])[:, None, :]                       # (L, 1, 3H)

    def stack_b(name):
        return jnp.stack([lp[name] for lp in layers])[:, None, :]          # (L, 1, ·) f32

    def stack_w(name):
        return jnp.stack([lp[name] for lp in layers]).astype(bf)           # (L, ·, ·) bf16

    return dict(
        wp=params["wp"].astype(bf), bp=params["bp"][None, :],
        pe=params["pe"],                                                   # (S, H) f32
        wqkv=wqkv, bqkv=bqkv,
        wo=stack_w("wo"), bo=stack_b("bo"),
        g1=stack_b("g1"), be1=stack_b("be1"),
        w1=stack_w("w1"), b1=stack_b("b1"),
        w2=stack_w("w2"), b2=stack_b("b2"),
        g2=stack_b("g2"), be2=stack_b("be2"),
        wh=params["wh"].T,                                                 # (1, H) f32
        bh=params["bh"][None, :],                                          # (1, 1) f32
    )


# ----------------------------------------------------------------------------
# Pure-JAX reference (standard multi-head attention; mirrors the bf16 matmul
# precision of the kernel so the comparison isolates kernel correctness).
# ----------------------------------------------------------------------------
def reference_forward(x, params, nhead):
    bf = jnp.bfloat16

    def mm(a, w):
        return jnp.dot(a.astype(bf), w.astype(bf), preferred_element_type=jnp.float32)

    def ln(y, g, b):
        mu = jnp.mean(y, axis=-1, keepdims=True)
        var = jnp.mean((y - mu) ** 2, axis=-1, keepdims=True)
        return (y - mu) * jax.lax.rsqrt(var + 1e-5) * g + b

    B, S, _ = x.shape
    H = params["wp"].shape[1]
    dh = H // nhead
    scale = 1.0 / np.sqrt(dh)

    y = mm(x, params["wp"]) + params["bp"] + params["pe"][None]            # (B, S, H)
    for lp in params["layers"]:
        q = mm(y, lp["wq"] * scale) + lp["bq"] * scale
        k = mm(y, lp["wk"]) + lp["bk"]
        v = mm(y, lp["wv"]) + lp["bv"]
        q4 = q.reshape(B, S, nhead, dh)
        k4 = k.reshape(B, S, nhead, dh)
        v4 = v.reshape(B, S, nhead, dh)
        s = jnp.einsum("bqhd,bkhd->bhqk", q4.astype(bf), k4.astype(bf),
                       preferred_element_type=jnp.float32)
        p = jax.nn.softmax(s, axis=-1)
        ctx = jnp.einsum("bhqk,bkhd->bqhd", p.astype(bf), v4.astype(bf),
                         preferred_element_type=jnp.float32).reshape(B, S, H)
        attn = mm(ctx, lp["wo"]) + lp["bo"]
        y = ln(y + attn, lp["g1"], lp["be1"])
        ff = mm(jnp.maximum(mm(y, lp["w1"]) + lp["b1"], 0.0), lp["w2"]) + lp["b2"]
        y = ln(y + ff, lp["g2"], lp["be2"])
    return jnp.dot(y[:, -1, :], params["wh"]) + params["bh"]               # f32 head


# ----------------------------------------------------------------------------
if __name__ == "__main__":
    B, S = 2, 8
    input_dim, hidden_dim, nhead, num_layers = 16, 32, 4, 2

    key = jax.random.PRNGKey(0)
    key, kx = jax.random.split(key)
    x = jax.random.normal(kx, (B, S, input_dim), jnp.float32)

    params = init_params(key, input_dim, hidden_dim, nhead, num_layers, S)
    packed = pack_params(params, nhead)

    out = transformer_forward(x, packed, nhead)
    out = jax.block_until_ready(out)

    ref = reference_forward(x, params, nhead)
    np.testing.assert_allclose(np.asarray(out), np.asarray(ref), rtol=1e-2, atol=1e-2)

    assert out.shape == (B, 1)
    print("KERNEL_OK")
</pallas_src>

<mosaic_0001>
module attributes {stable_mosaic.version = 11 : i64} {
  func.func @fused_layer_kernel(%arg0: i32, %arg1: memref<16x16xbf16, #tpu.memory_space<vmem>>, %arg2: memref<8x32xf32, #tpu.memory_space<vmem>>, %arg3: memref<16x32xbf16, #tpu.memory_space<vmem>>, %arg4: memref<1x32xf32, #tpu.memory_space<vmem>>, %arg5: memref<1x32x96xbf16, #tpu.memory_space<vmem>>, %arg6: memref<1x1x96xf32, #tpu.memory_space<vmem>>, %arg7: memref<1x32x32xbf16, #tpu.memory_space<vmem>>, %arg8: memref<1x1x32xf32, #tpu.memory_space<vmem>>, %arg9: memref<1x1x32xf32, #tpu.memory_space<vmem>>, %arg10: memref<1x1x32xf32, #tpu.memory_space<vmem>>, %arg11: memref<1x32x128xbf16, #tpu.memory_space<vmem>>, %arg12: memref<1x1x128xf32, #tpu.memory_space<vmem>>, %arg13: memref<1x128x32xbf16, #tpu.memory_space<vmem>>, %arg14: memref<1x1x32xf32, #tpu.memory_space<vmem>>, %arg15: memref<1x1x32xf32, #tpu.memory_space<vmem>>, %arg16: memref<1x1x32xf32, #tpu.memory_space<vmem>>, %arg17: memref<1x32xf32, #tpu.memory_space<vmem>>, %arg18: memref<1x1xf32, #tpu.memory_space<vmem>>, %arg19: memref<2x128xf32, #tpu.memory_space<vmem>>, %arg20: memref<16x32xf32, #tpu.memory_space<vmem>>) attributes {dimension_semantics = [#tpu.dimension_semantics<arbitrary>], iteration_bounds = array<i64: 2>, scalar_prefetch = 0 : i64, scratch_operands = 1 : i64, tpu.core_type = #tpu.core_type<tc>, window_params = [{pipeline_mode = #tpu.pipeline_mode<synchronous>, transform_indices = @transform_0, window_bounds = array<i64: 16, 16>}, {pipeline_mode = #tpu.pipeline_mode<synchronous>, transform_indices = @transform_1, window_bounds = array<i64: 8, 32>}, {pipeline_mode = #tpu.pipeline_mode<synchronous>, transform_indices = @transform_2, window_bounds = array<i64: 16, 32>}, {pipeline_mode = #tpu.pipeline_mode<synchronous>, transform_indices = @transform_3, window_bounds = array<i64: 1, 32>}, {transform_indices = @transform_4, window_bounds = array<i64: 1, 32, 96>}, {transform_indices = @transform_5, window_bounds = array<i64: 1, 1, 96>}, {transform_indices = @transform_6, window_bounds = array<i64: 1, 32, 32>}, {transform_indices = @transform_7, window_bounds = array<i64: 1, 1, 32>}, {transform_indices = @transform_8, window_bounds = array<i64: 1, 1, 32>}, {transform_indices = @transform_9, window_bounds = array<i64: 1, 1, 32>}, {transform_indices = @transform_10, window_bounds = array<i64: 1, 32, 128>}, {transform_indices = @transform_11, window_bounds = array<i64: 1, 1, 128>}, {transform_indices = @transform_12, window_bounds = array<i64: 1, 128, 32>}, {transform_indices = @transform_13, window_bounds = array<i64: 1, 1, 32>}, {transform_indices = @transform_14, window_bounds = array<i64: 1, 1, 32>}, {transform_indices = @transform_15, window_bounds = array<i64: 1, 1, 32>}, {pipeline_mode = #tpu.pipeline_mode<synchronous>, transform_indices = @transform_16, window_bounds = array<i64: 1, 32>}, {pipeline_mode = #tpu.pipeline_mode<synchronous>, transform_indices = @transform_17, window_bounds = array<i64: 1, 1>}, {pipeline_mode = #tpu.pipeline_mode<synchronous>, transform_indices = @transform_18, window_bounds = array<i64: 2, 128>}]} {
    %c0_i32 = arith.constant 0 : i32
    %0 = arith.cmpi eq, %arg0, %c0_i32 : i32
    %1 = arith.extui %0 : i1 to i32
    %c0_i32_0 = arith.constant 0 : i32
    %2 = arith.cmpi ne, %1, %c0_i32_0 : i32
    scf.if %2 {
      %c0_71 = arith.constant 0 : index
      %c0_72 = arith.constant 0 : index
      %174 = vector.load %arg1[%c0_71, %c0_72] : memref<16x16xbf16, #tpu.memory_space<vmem>>, vector<16x16xbf16>
      %c0_73 = arith.constant 0 : index
      %c0_74 = arith.constant 0 : index
      %175 = vector.load %arg3[%c0_73, %c0_74] : memref<16x32xbf16, #tpu.memory_space<vmem>>, vector<16x32xbf16>
      %cst_75 = arith.constant dense<0.000000e+00> : vector<16x32xf32>
      %176 = tpu.matmul %174, %175, %cst_75 {dimension_numbers = #tpu.dot_dimension_numbers<[1], [0], [0], [1], [0, 0, 1, 1], [], []>} : vector<16x16xbf16>, vector<16x32xbf16>, vector<16x32xf32> -> vector<16x32xf32>
      %c0_76 = arith.constant 0 : index
      %c0_77 = arith.constant 0 : index
      %177 = vector.load %arg4[%c0_76, %c0_77] : memref<1x32xf32, #tpu.memory_space<vmem>>, vector<1x32xf32>
      %178 = vector.broadcast %177 : vector<1x32xf32> to vector<16x32xf32>
      %179 = arith.addf %176, %178 : vector<16x32xf32>
      %180 = vector.shape_cast %179 : vector<16x32xf32> to vector<2x8x32xf32>
      %c0_78 = arith.constant 0 : index
      %c0_79 = arith.constant 0 : index
      %181 = vector.load %arg2[%c0_78, %c0_79] : memref<8x32xf32, #tpu.memory_space<vmem>>, vector<8x32xf32>
      %182 = vector.shape_cast %181 : vector<8x32xf32> to vector<1x8x32xf32>
      %183 = vector.broadcast %182 : vector<1x8x32xf32> to vector<2x8x32xf32>
      %184 = arith.addf %180, %183 : vector<2x8x32xf32>
      %185 = vector.shape_cast %184 : vector<2x8x32xf32> to vector<16x32xf32>
      %c0_80 = arith.constant 0 : index
      %c0_81 = arith.constant 0 : index
      %186 = vector.load %arg20[%c0_80, %c0_81] : memref<16x32xf32, #tpu.memory_space<vmem>>, vector<16x32xf32>
      tpu.vector_store %arg20[%c0_80, %c0_81], %185 {strides = array<i32>} : memref<16x32xf32, #tpu.memory_space<vmem>>, vector<16x32xf32>,
    } else {
    }
    %c0 = arith.constant 0 : index
    %c0_1 = arith.constant 0 : index
    %3 = vector.load %arg20[%c0, %c0_1] : memref<16x32xf32, #tpu.memory_space<vmem>>, vector<16x32xf32>
    %4 = arith.truncf %3 : vector<16x32xf32> to vector<16x32xbf16>
    %c0_2 = arith.constant 0 : index
    %c0_3 = arith.constant 0 : index
    %c0_4 = arith.constant 0 : index
    %5 = vector.load %arg5[%c0_2, %c0_3, %c0_4] : memref<1x32x96xbf16, #tpu.memory_space<vmem>>, vector<1x32x96xbf16>
    %6 = vector.shape_cast %5 : vector<1x32x96xbf16> to vector<32x96xbf16>
    %cst = arith.constant dense<0.000000e+00> : vector<16x96xf32>
    %7 = tpu.matmul %4, %6, %cst {dimension_numbers = #tpu.dot_dimension_numbers<[1], [0], [0], [1], [0, 0, 1, 1], [], []>} : vector<16x32xbf16>, vector<32x96xbf16>, vector<16x96xf32> -> vector<16x96xf32>
    %c0_5 = arith.constant 0 : index
    %c0_6 = arith.constant 0 : index
    %c0_7 = arith.constant 0 : index
    %8 = vector.load %arg6[%c0_5, %c0_6, %c0_7] : memref<1x1x96xf32, #tpu.memory_space<vmem>>, vector<1x1x96xf32>
    %9 = vector.shape_cast %8 : vector<1x1x96xf32> to vector<1x96xf32>
    %10 = vector.broadcast %9 : vector<1x96xf32> to vector<16x96xf32>
    %11 = arith.addf %7, %10 : vector<16x96xf32>
    %12 = arith.truncf %11 : vector<16x96xf32> to vector<16x96xbf16>
    %13 = vector.extract_strided_slice %12 {offsets = [0, 0], sizes = [16, 8], strides = [1, 1]} : vector<16x96xbf16> to vector<16x8xbf16>
    %14 = vector.shape_cast %13 : vector<16x8xbf16> to vector<2x8x8xbf16>
    %15 = vector.extract_strided_slice %12 {offsets = [0, 32], sizes = [16, 8], strides = [1, 1]} : vector<16x96xbf16> to vector<16x8xbf16>
    %16 = vector.shape_cast %15 : vector<16x8xbf16> to vector<2x8x8xbf16>
    %17 = vector.extract_strided_slice %12 {offsets = [0, 64], sizes = [16, 8], strides = [1, 1]} : vector<16x96xbf16> to vector<16x8xbf16>
    %18 = vector.shape_cast %17 : vector<16x8xbf16> to vector<2x8x8xbf16>
    "tpu.trace_start"() <{level = 10 : i32, message = "bqd,bkd->bqk"}> : () -> ()
    %cst_8 = arith.constant dense<0.000000e+00> : vector<2x8x8xf32>
    %19 = tpu.matmul %14, %16, %cst_8 {dimension_numbers = #tpu.dot_dimension_numbers<[2], [2], [1], [1], [0, 0, 0, 1, 1, 1], [0], [0]>} : vector<2x8x8xbf16>, vector<2x8x8xbf16>, vector<2x8x8xf32> -> vector<2x8x8xf32>
    "tpu.trace_stop"() : () -> ()
    %cst_9 = arith.constant dense<0xFF800000> : vector<2x8xf32>
    %20 = vector.multi_reduction <maximumf>, %19, %cst_9 [2] : vector<2x8x8xf32> to vector<2x8xf32>
    %21 = vector.shape_cast %20 : vector<2x8xf32> to vector<2x8x1xf32>
    %22 = vector.broadcast %21 : vector<2x8x1xf32> to vector<2x8x8xf32>
    %23 = arith.subf %19, %22 : vector<2x8x8xf32>
    %24 = math.exp %23 : vector<2x8x8xf32>
    %cst_10 = arith.constant dense<0.000000e+00> : vector<2x8xf32>
    %25 = vector.multi_reduction <add>, %24, %cst_10 [2] : vector<2x8x8xf32> to vector<2x8xf32>
    %26 = vector.shape_cast %25 : vector<2x8xf32> to vector<2x8x1xf32>
    %27 = vector.broadcast %26 : vector<2x8x1xf32> to vector<2x8x8xf32>
    %28 = arith.divf %24, %27 : vector<2x8x8xf32>
    %29 = arith.truncf %28 : vector<2x8x8xf32> to vector<2x8x8xbf16>
    "tpu.trace_start"() <{level = 10 : i32, message = "bqk,bkd->bqd"}> : () -> ()
    %cst_11 = arith.constant dense<0.000000e+00> : vector<2x8x8xf32>
    %30 = tpu.matmul %29, %18, %cst_11 {dimension_numbers = #tpu.dot_dimension_numbers<[2], [1], [1], [2], [0, 0, 0, 1, 1, 2], [0], [0]>} : vector<2x8x8xbf16>, vector<2x8x8xbf16>, vector<2x8x8xf32> -> vector<2x8x8xf32>
    "tpu.trace_stop"() : () -> ()
    %31 = vector.shape_cast %30 : vector<2x8x8xf32> to vector<16x8xf32>
    %32 = vector.extract_strided_slice %12 {offsets = [0, 8], sizes = [16, 8], strides = [1, 1]} : vector<16x96xbf16> to vector<16x8xbf16>
    %33 = vector.shape_cast %32 : vector<16x8xbf16> to vector<2x8x8xbf16>
    %34 = vector.extract_strided_slice %12 {offsets = [0, 40], sizes = [16, 8], strides = [1, 1]} : vector<16x96xbf16> to vector<16x8xbf16>
    %35 = vector.shape_cast %34 : vector<16x8xbf16> to vector<2x8x8xbf16>
    %36 = vector.extract_strided_slice %12 {offsets = [0, 72], sizes = [16, 8], strides = [1, 1]} : vector<16x96xbf16> to vector<16x8xbf16>
    %37 = vector.shape_cast %36 : vector<16x8xbf16> to vector<2x8x8xbf16>
    "tpu.trace_start"() <{level = 10 : i32, message = "bqd,bkd->bqk"}> : () -> ()
    %cst_12 = arith.constant dense<0.000000e+00> : vector<2x8x8xf32>
    %38 = tpu.matmul %33, %35, %cst_12 {dimension_numbers = #tpu.dot_dimension_numbers<[2], [2], [1], [1], [0, 0, 0, 1, 1, 1], [0], [0]>} : vector<2x8x8xbf16>, vector<2x8x8xbf16>, vector<2x8x8xf32> -> vector<2x8x8xf32>
    "tpu.trace_stop"() : () -> ()
    %cst_13 = arith.constant dense<0xFF800000> : vector<2x8xf32>
    %39 = vector.multi_reduction <maximumf>, %38, %cst_13 [2] : vector<2x8x8xf32> to vector<2x8xf32>
    %40 = vector.shape_cast %39 : vector<2x8xf32> to vector<2x8x1xf32>
    %41 = vector.broadcast %40 : vector<2x8x1xf32> to vector<2x8x8xf32>
    %42 = arith.subf %38, %41 : vector<2x8x8xf32>
    %43 = math.exp %42 : vector<2x8x8xf32>
    %cst_14 = arith.constant dense<0.000000e+00> : vector<2x8xf32>
    %44 = vector.multi_reduction <add>, %43, %cst_14 [2] : vector<2x8x8xf32> to vector<2x8xf32>
    %45 = vector.shape_cast %44 : vector<2x8xf32> to vector<2x8x1xf32>
    %46 = vector.broadcast %45 : vector<2x8x1xf32> to vector<2x8x8xf32>
    %47 = arith.divf %43, %46 : vector<2x8x8xf32>
    %48 = arith.truncf %47 : vector<2x8x8xf32> to vector<2x8x8xbf16>
    "tpu.trace_start"() <{level = 10 : i32, message = "bqk,bkd->bqd"}> : () -> ()
    %cst_15 = arith.constant dense<0.000000e+00> : vector<2x8x8xf32>
    %49 = tpu.matmul %48, %37, %cst_15 {dimension_numbers = #tpu.dot_dimension_numbers<[2], [1], [1], [2], [0, 0, 0, 1, 1, 2], [0], [0]>} : vector<2x8x8xbf16>, vector<2x8x8xbf16>, vector<2x8x8xf32> -> vector<2x8x8xf32>
    "tpu.trace_stop"() : () -> ()
    %50 = vector.shape_cast %49 : vector<2x8x8xf32> to vector<16x8xf32>
    %51 = vector.extract_strided_slice %12 {offsets = [0, 16], sizes = [16, 8], strides = [1, 1]} : vector<16x96xbf16> to vector<16x8xbf16>
    %52 = vector.shape_cast %51 : vector<16x8xbf16> to vector<2x8x8xbf16>
    %53 = vector.extract_strided_slice %12 {offsets = [0, 48], sizes = [16, 8], strides = [1, 1]} : vector<16x96xbf16> to vector<16x8xbf16>
    %54 = vector.shape_cast %53 : vector<16x8xbf16> to vector<2x8x8xbf16>
    %55 = vector.extract_strided_slice %12 {offsets = [0, 80], sizes = [16, 8], strides = [1, 1]} : vector<16x96xbf16> to vector<16x8xbf16>
    %56 = vector.shape_cast %55 : vector<16x8xbf16> to vector<2x8x8xbf16>
    "tpu.trace_start"() <{level = 10 : i32, message = "bqd,bkd->bqk"}> : () -> ()
    %cst_16 = arith.constant dense<0.000000e+00> : vector<2x8x8xf32>
    %57 = tpu.matmul %52, %54, %cst_16 {dimension_numbers = #tpu.dot_dimension_numbers<[2], [2], [1], [1], [0, 0, 0, 1, 1, 1], [0], [0]>} : vector<2x8x8xbf16>, vector<2x8x8xbf16>, vector<2x8x8xf32> -> vector<2x8x8xf32>
    "tpu.trace_stop"() : () -> ()
    %cst_17 = arith.constant dense<0xFF800000> : vector<2x8xf32>
    %58 = vector.multi_reduction <maximumf>, %57, %cst_17 [2] : vector<2x8x8xf32> to vector<2x8xf32>
    %59 = vector.shape_cast %58 : vector<2x8xf32> to vector<2x8x1xf32>
    %60 = vector.broadcast %59 : vector<2x8x1xf32> to vector<2x8x8xf32>
    %61 = arith.subf %57, %60 : vector<2x8x8xf32>
    %62 = math.exp %61 : vector<2x8x8xf32>
    %cst_18 = arith.constant dense<0.000000e+00> : vector<2x8xf32>
    %63 = vector.multi_reduction <add>, %62, %cst_18 [2] : vector<2x8x8xf32> to vector<2x8xf32>
    %64 = vector.shape_cast %63 : vector<2x8xf32> to vector<2x8x1xf32>
    %65 = vector.broadcast %64 : vector<2x8x1xf32> to vector<2x8x8xf32>
    %66 = arith.divf %62, %65 : vector<2x8x8xf32>
    %67 = arith.truncf %66 : vector<2x8x8xf32> to vector<2x8x8xbf16>
    "tpu.trace_start"() <{level = 10 : i32, message = "bqk,bkd->bqd"}> : () -> ()
    %cst_19 = arith.constant dense<0.000000e+00> : vector<2x8x8xf32>
    %68 = tpu.matmul %67, %56, %cst_19 {dimension_numbers = #tpu.dot_dimension_numbers<[2], [1], [1], [2], [0, 0, 0, 1, 1, 2], [0], [0]>} : vector<2x8x8xbf16>, vector<2x8x8xbf16>, vector<2x8x8xf32> -> vector<2x8x8xf32>
    "tpu.trace_stop"() : () -> ()
    %69 = vector.shape_cast %68 : vector<2x8x8xf32> to vector<16x8xf32>
    %70 = vector.extract_strided_slice %12 {offsets = [0, 24], sizes = [16, 8], strides = [1, 1]} : vector<16x96xbf16> to vector<16x8xbf16>
    %71 = vector.shape_cast %70 : vector<16x8xbf16> to vector<2x8x8xbf16>
    %72 = vector.extract_strided_slice %12 {offsets = [0, 56], sizes = [16, 8], strides = [1, 1]} : vector<16x96xbf16> to vector<16x8xbf16>
    %73 = vector.shape_cast %72 : vector<16x8xbf16> to vector<2x8x8xbf16>
    %74 = vector.extract_strided_slice %12 {offsets = [0, 88], sizes = [16, 8], strides = [1, 1]} : vector<16x96xbf16> to vector<16x8xbf16>
    %75 = vector.shape_cast %74 : vector<16x8xbf16> to vector<2x8x8xbf16>
    "tpu.trace_start"() <{level = 10 : i32, message = "bqd,bkd->bqk"}> : () -> ()
    %cst_20 = arith.constant dense<0.000000e+00> : vector<2x8x8xf32>
    %76 = tpu.matmul %71, %73, %cst_20 {dimension_numbers = #tpu.dot_dimension_numbers<[2], [2], [1], [1], [0, 0, 0, 1, 1, 1], [0], [0]>} : vector<2x8x8xbf16>, vector<2x8x8xbf16>, vector<2x8x8xf32> -> vector<2x8x8xf32>
    "tpu.trace_stop"() : () -> ()
    %cst_21 = arith.constant dense<0xFF800000> : vector<2x8xf32>
    %77 = vector.multi_reduction <maximumf>, %76, %cst_21 [2] : vector<2x8x8xf32> to vector<2x8xf32>
    %78 = vector.shape_cast %77 : vector<2x8xf32> to vector<2x8x1xf32>
    %79 = vector.broadcast %78 : vector<2x8x1xf32> to vector<2x8x8xf32>
    %80 = arith.subf %76, %79 : vector<2x8x8xf32>
    %81 = math.exp %80 : vector<2x8x8xf32>
    %cst_22 = arith.constant dense<0.000000e+00> : vector<2x8xf32>
    %82 = vector.multi_reduction <add>, %81, %cst_22 [2] : vector<2x8x8xf32> to vector<2x8xf32>
    %83 = vector.shape_cast %82 : vector<2x8xf32> to vector<2x8x1xf32>
    %84 = vector.broadcast %83 : vector<2x8x1xf32> to vector<2x8x8xf32>
    %85 = arith.divf %81, %84 : vector<2x8x8xf32>
    %86 = arith.truncf %85 : vector<2x8x8xf32> to vector<2x8x8xbf16>
    "tpu.trace_start"() <{level = 10 : i32, message = "bqk,bkd->bqd"}> : () -> ()
    %cst_23 = arith.constant dense<0.000000e+00> : vector<2x8x8xf32>
    %87 = tpu.matmul %86, %75, %cst_23 {dimension_numbers = #tpu.dot_dimension_numbers<[2], [1], [1], [2], [0, 0, 0, 1, 1, 2], [0], [0]>} : vector<2x8x8xbf16>, vector<2x8x8xbf16>, vector<2x8x8xf32> -> vector<2x8x8xf32>
    "tpu.trace_stop"() : () -> ()
    %88 = vector.shape_cast %87 : vector<2x8x8xf32> to vector<16x8xf32>
    %89 = tpu.concatenate %31, %50, %69, %88 in 1 : vector<16x8xf32>, vector<16x8xf32>, vector<16x8xf32>, vector<16x8xf32> -> vector<16x32xf32>
    %90 = arith.truncf %89 : vector<16x32xf32> to vector<16x32xbf16>
    %c0_24 = arith.constant 0 : index
    %c0_25 = arith.constant 0 : index
    %c0_26 = arith.constant 0 : index
    %91 = vector.load %arg7[%c0_24, %c0_25, %c0_26] : memref<1x32x32xbf16, #tpu.memory_space<vmem>>, vector<1x32x32xbf16>
    %92 = vector.shape_cast %91 : vector<1x32x32xbf16> to vector<32x32xbf16>
    %cst_27 = arith.constant dense<0.000000e+00> : vector<16x32xf32>
    %93 = tpu.matmul %90, %92, %cst_27 {dimension_numbers = #tpu.dot_dimension_numbers<[1], [0], [0], [1], [0, 0, 1, 1], [], []>} : vector<16x32xbf16>, vector<32x32xbf16>, vector<16x32xf32> -> vector<16x32xf32>
    %c0_28 = arith.constant 0 : index
    %c0_29 = arith.constant 0 : index
    %c0_30 = arith.constant 0 : index
    %94 = vector.load %arg8[%c0_28, %c0_29, %c0_30] : memref<1x1x32xf32, #tpu.memory_space<vmem>>, vector<1x1x32xf32>
    %95 = vector.shape_cast %94 : vector<1x1x32xf32> to vector<1x32xf32>
    %96 = vector.broadcast %95 : vector<1x32xf32> to vector<16x32xf32>
    %97 = arith.addf %93, %96 : vector<16x32xf32>
    %98 = arith.addf %3, %97 : vector<16x32xf32>
    %cst_31 = arith.constant dense<0.000000e+00> : vector<16xf32>
    %99 = vector.multi_reduction <add>, %98, %cst_31 [1] : vector<16x32xf32> to vector<16xf32>
    %100 = vector.shape_cast %99 : vector<16xf32> to vector<16x1xf32>
    %cst_32 = arith.constant 3.200000e+01 : f32
    %101 = vector.broadcast %cst_32 : f32 to vector<16x1xf32>
    %102 = arith.divf %100, %101 : vector<16x1xf32>
    %103 = vector.broadcast %102 : vector<16x1xf32> to vector<16x32xf32>
    %104 = arith.subf %98, %103 : vector<16x32xf32>
    %105 = arith.mulf %104, %104 : vector<16x32xf32>
    %cst_33 = arith.constant dense<0.000000e+00> : vector<16xf32>
    %106 = vector.multi_reduction <add>, %105, %cst_33 [1] : vector<16x32xf32> to vector<16xf32>
    %107 = vector.shape_cast %106 : vector<16xf32> to vector<16x1xf32>
    %cst_34 = arith.constant 3.200000e+01 : f32
    %108 = vector.broadcast %cst_34 : f32 to vector<16x1xf32>
    %109 = arith.divf %107, %108 : vector<16x1xf32>
    %110 = vector.broadcast %102 : vector<16x1xf32> to vector<16x32xf32>
    %111 = arith.subf %98, %110 : vector<16x32xf32>
    %cst_35 = arith.constant 9.99999974E-6 : f32
    %112 = vector.broadcast %cst_35 : f32 to vector<16x1xf32>
    %113 = arith.addf %109, %112 : vector<16x1xf32>
    %114 = math.rsqrt %113 : vector<16x1xf32>
    %115 = vector.broadcast %114 : vector<16x1xf32> to vector<16x32xf32>
    %116 = arith.mulf %111, %115 : vector<16x32xf32>
    %c0_36 = arith.constant 0 : index
    %c0_37 = arith.constant 0 : index
    %c0_38 = arith.constant 0 : index
    %117 = vector.load %arg9[%c0_36, %c0_37, %c0_38] : memref<1x1x32xf32, #tpu.memory_space<vmem>>, vector<1x1x32xf32>
    %118 = vector.shape_cast %117 : vector<1x1x32xf32> to vector<1x32xf32>
    %119 = vector.broadcast %118 : vector<1x32xf32> to vector<16x32xf32>
    %120 = arith.mulf %116, %119 : vector<16x32xf32>
    %c0_39 = arith.constant 0 : index
    %c0_40 = arith.constant 0 : index
    %c0_41 = arith.constant 0 : index
    %121 = vector.load %arg10[%c0_39, %c0_40, %c0_41] : memref<1x1x32xf32, #tpu.memory_space<vmem>>, vector<1x1x32xf32>
    %122 = vector.shape_cast %121 : vector<1x1x32xf32> to vector<1x32xf32>
    %123 = vector.broadcast %122 : vector<1x32xf32> to vector<16x32xf32>
    %124 = arith.addf %120, %123 : vector<16x32xf32>
    %125 = arith.truncf %124 : vector<16x32xf32> to vector<16x32xbf16>
    %c0_42 = arith.constant 0 : index
    %c0_43 = arith.constant 0 : index
    %c0_44 = arith.constant 0 : index
    %126 = vector.load %arg11[%c0_42, %c0_43, %c0_44] : memref<1x32x128xbf16, #tpu.memory_space<vmem>>, vector<1x32x128xbf16>
    %127 = vector.shape_cast %126 : vector<1x32x128xbf16> to vector<32x128xbf16>
    %cst_45 = arith.constant dense<0.000000e+00> : vector<16x128xf32>
    %128 = tpu.matmul %125, %127, %cst_45 {dimension_numbers = #tpu.dot_dimension_numbers<[1], [0], [0], [1], [0, 0, 1, 1], [], []>} : vector<16x32xbf16>, vector<32x128xbf16>, vector<16x128xf32> -> vector<16x128xf32>
    %c0_46 = arith.constant 0 : index
    %c0_47 = arith.constant 0 : index
    %c0_48 = arith.constant 0 : index
    %129 = vector.load %arg12[%c0_46, %c0_47, %c0_48] : memref<1x1x128xf32, #tpu.memory_space<vmem>>, vector<1x1x128xf32>
    %130 = vector.shape_cast %129 : vector<1x1x128xf32> to vector<1x128xf32>
    %131 = vector.broadcast %130 : vector<1x128xf32> to vector<16x128xf32>
    %132 = arith.addf %128, %131 : vector<16x128xf32>
    %cst_49 = arith.constant 0.000000e+00 : f32
    %133 = vector.broadcast %cst_49 : f32 to vector<16x128xf32>
    %134 = arith.maximumf %132, %133 : vector<16x128xf32>
    %135 = arith.truncf %134 : vector<16x128xf32> to vector<16x128xbf16>
    %c0_50 = arith.constant 0 : index
    %c0_51 = arith.constant 0 : index
    %c0_52 = arith.constant 0 : index
    %136 = vector.load %arg13[%c0_50, %c0_51, %c0_52] : memref<1x128x32xbf16, #tpu.memory_space<vmem>>, vector<1x128x32xbf16>
    %137 = vector.shape_cast %136 : vector<1x128x32xbf16> to vector<128x32xbf16>
    %cst_53 = arith.constant dense<0.000000e+00> : vector<16x32xf32>
    %138 = tpu.matmul %135, %137, %cst_53 {dimension_numbers = #tpu.dot_dimension_numbers<[1], [0], [0], [1], [0, 0, 1, 1], [], []>} : vector<16x128xbf16>, vector<128x32xbf16>, vector<16x32xf32> -> vector<16x32xf32>
    %c0_54 = arith.constant 0 : index
    %c0_55 = arith.constant 0 : index
    %c0_56 = arith.constant 0 : index
    %139 = vector.load %arg14[%c0_54, %c0_55, %c0_56] : memref<1x1x32xf32, #tpu.memory_space<vmem>>, vector<1x1x32xf32>
    %140 = vector.shape_cast %139 : vector<1x1x32xf32> to vector<1x32xf32>
    %141 = vector.broadcast %140 : vector<1x32xf32> to vector<16x32xf32>
    %142 = arith.addf %138, %141 : vector<16x32xf32>
    %143 = arith.addf %124, %142 : vector<16x32xf32>
    %cst_57 = arith.constant dense<0.000000e+00> : vector<16xf32>
    %144 = vector.multi_reduction <add>, %143, %cst_57 [1] : vector<16x32xf32> to vector<16xf32>
    %145 = vector.shape_cast %144 : vector<16xf32> to vector<16x1xf32>
    %cst_58 = arith.constant 3.200000e+01 : f32
    %146 = vector.broadcast %cst_58 : f32 to vector<16x1xf32>
    %147 = arith.divf %145, %146 : vector<16x1xf32>
    %148 = vector.broadcast %147 : vector<16x1xf32> to vector<16x32xf32>
    %149 = arith.subf %143, %148 : vector<16x32xf32>
    %150 = arith.mulf %149, %149 : vector<16x32xf32>
    %cst_59 = arith.constant dense<0.000000e+00> : vector<16xf32>
    %151 = vector.multi_reduction <add>, %150, %cst_59 [1] : vector<16x32xf32> to vector<16xf32>
    %152 = vector.shape_cast %151 : vector<16xf32> to vector<16x1xf32>
    %cst_60 = arith.constant 3.200000e+01 : f32
    %153 = vector.broadcast %cst_60 : f32 to vector<16x1xf32>
    %154 = arith.divf %152, %153 : vector<16x1xf32>
    %155 = vector.broadcast %147 : vector<16x1xf32> to vector<16x32xf32>
    %156 = arith.subf %143, %155 : vector<16x32xf32>
    %cst_61 = arith.constant 9.99999974E-6 : f32
    %157 = vector.broadcast %cst_61 : f32 to vector<16x1xf32>
    %158 = arith.addf %154, %157 : vector<16x1xf32>
    %159 = math.rsqrt %158 : vector<16x1xf32>
    %160 = vector.broadcast %159 : vector<16x1xf32> to vector<16x32xf32>
    %161 = arith.mulf %156, %160 : vector<16x32xf32>
    %c0_62 = arith.constant 0 : index
    %c0_63 = arith.constant 0 : index
    %c0_64 = arith.constant 0 : index
    %162 = vector.load %arg15[%c0_62, %c0_63, %c0_64] : memref<1x1x32xf32, #tpu.memory_space<vmem>>, vector<1x1x32xf32>
    %163 = vector.shape_cast %162 : vector<1x1x32xf32> to vector<1x32xf32>
    %164 = vector.broadcast %163 : vector<1x32xf32> to vector<16x32xf32>
    %165 = arith.mulf %161, %164 : vector<16x32xf32>
    %c0_65 = arith.constant 0 : index
    %c0_66 = arith.constant 0 : index
    %c0_67 = arith.constant 0 : index
    %166 = vector.load %arg16[%c0_65, %c0_66, %c0_67] : memref<1x1x32xf32, #tpu.memory_space<vmem>>, vector<1x1x32xf32>
    %167 = vector.shape_cast %166 : vector<1x1x32xf32> to vector<1x32xf32>
    %168 = vector.broadcast %167 : vector<1x32xf32> to vector<16x32xf32>
    %169 = arith.addf %165, %168 : vector<16x32xf32>
    %c0_68 = arith.constant 0 : index
    %c0_69 = arith.constant 0 : index
    %170 = vector.load %arg20[%c0_68, %c0_69] : memref<16x32xf32, #tpu.memory_space<vmem>>, vector<16x32xf32>
    tpu.vector_store %arg20[%c0_68, %c0_69], %169 {strides = array<i32>} : memref<16x32xf32, #tpu.memory_space<vmem>>, vector<16x32xf32>,
    %c1_i32 = arith.constant 1 : i32
    %171 = arith.cmpi eq, %arg0, %c1_i32 : i32
    %172 = arith.extui %171 : i1 to i32
    %c0_i32_70 = arith.constant 0 : i32
    %173 = arith.cmpi ne, %172, %c0_i32_70 : i32
    scf.if %173 {
      %174 = vector.shape_cast %169 : vector<16x32xf32> to vector<2x8x32xf32>
      %175 = vector.extract_strided_slice %174 {offsets = [0, 7, 0], sizes = [2, 1, 32], strides = [1, 1, 1]} : vector<2x8x32xf32> to vector<2x1x32xf32>
      %176 = vector.shape_cast %175 : vector<2x1x32xf32> to vector<2x32xf32>
      %c0_71 = arith.constant 0 : index
      %c0_72 = arith.constant 0 : index
      %177 = vector.load %arg17[%c0_71, %c0_72] : memref<1x32xf32, #tpu.memory_space<vmem>>, vector<1x32xf32>
      %178 = vector.broadcast %177 : vector<1x32xf32> to vector<2x32xf32>
      %179 = arith.mulf %176, %178 : vector<2x32xf32>
      %cst_73 = arith.constant dense<0.000000e+00> : vector<2xf32>
      %180 = vector.multi_reduction <add>, %179, %cst_73 [1] : vector<2x32xf32> to vector<2xf32>
      %181 = vector.shape_cast %180 : vector<2xf32> to vector<2x1xf32>
      %c0_74 = arith.constant 0 : index
      %c0_75 = arith.constant 0 : index
      %182 = vector.load %arg18[%c0_74, %c0_75] : memref<1x1xf32, #tpu.memory_space<vmem>>, vector<1x1xf32>
      %183 = vector.broadcast %182 : vector<1x1xf32> to vector<2x1xf32>
      %184 = arith.addf %181, %183 : vector<2x1xf32>
      %185 = vector.shape_cast %184 : vector<2x1xf32> to vector<2x1xf32>
      %186 = vector.broadcast %185 : vector<2x1xf32> to vector<2x128xf32>
      %c0_76 = arith.constant 0 : index
      %c0_77 = arith.constant 0 : index
      %187 = vector.load %arg19[%c0_76, %c0_77] : memref<2x128xf32, #tpu.memory_space<vmem>>, vector<2x128xf32>
      tpu.vector_store %arg19[%c0_76, %c0_77], %186 {strides = array<i32>} : memref<2x128xf32, #tpu.memory_space<vmem>>, vector<2x128xf32>,
    } else {
    }
    return
  }
  func.func @transform_0(%arg0: i32) -> (i32, i32) {
    %c0_i32 = arith.constant 0 : i32
    %c0_i32_0 = arith.constant 0 : i32
    %c0_i32_1 = arith.constant 0 : i32
    return %c0_i32, %c0_i32_0 : i32, i32
  }
  func.func @transform_1(%arg0: i32) -> (i32, i32) {
    %c0_i32 = arith.constant 0 : i32
    %c0_i32_0 = arith.constant 0 : i32
    %c0_i32_1 = arith.constant 0 : i32
    return %c0_i32, %c0_i32_0 : i32, i32
  }
  func.func @transform_2(%arg0: i32) -> (i32, i32) {
    %c0_i32 = arith.constant 0 : i32
    %c0_i32_0 = arith.constant 0 : i32
    %c0_i32_1 = arith.constant 0 : i32
    return %c0_i32, %c0_i32_0 : i32, i32
  }
  func.func @transform_3(%arg0: i32) -> (i32, i32) {
    %c0_i32 = arith.constant 0 : i32
    %c0_i32_0 = arith.constant 0 : i32
    %c0_i32_1 = arith.constant 0 : i32
    return %c0_i32, %c0_i32_0 : i32, i32
  }
  func.func @transform_4(%arg0: i32) -> (i32, i32, i32) {
    %c0_i32 = arith.constant 0 : i32
    %c0_i32_0 = arith.constant 0 : i32
    %c0_i32_1 = arith.constant 0 : i32
    return %arg0, %c0_i32, %c0_i32_0 : i32, i32, i32
  }
  func.func @transform_5(%arg0: i32) -> (i32, i32, i32) {
    %c0_i32 = arith.constant 0 : i32
    %c0_i32_0 = arith.constant 0 : i32
    %c0_i32_1 = arith.constant 0 : i32
    return %arg0, %c0_i32, %c0_i32_0 : i32, i32, i32
  }
  func.func @transform_6(%arg0: i32) -> (i32, i32, i32) {
    %c0_i32 = arith.constant 0 : i32
    %c0_i32_0 = arith.constant 0 : i32
    %c0_i32_1 = arith.constant 0 : i32
    return %arg0, %c0_i32, %c0_i32_0 : i32, i32, i32
  }
  func.func @transform_7(%arg0: i32) -> (i32, i32, i32) {
    %c0_i32 = arith.constant 0 : i32
    %c0_i32_0 = arith.constant 0 : i32
    %c0_i32_1 = arith.constant 0 : i32
    return %arg0, %c0_i32, %c0_i32_0 : i32, i32, i32
  }
  func.func @transform_8(%arg0: i32) -> (i32, i32, i32) {
    %c0_i32 = arith.constant 0 : i32
    %c0_i32_0 = arith.constant 0 : i32
    %c0_i32_1 = arith.constant 0 : i32
    return %arg0, %c0_i32, %c0_i32_0 : i32, i32, i32
  }
  func.func @transform_9(%arg0: i32) -> (i32, i32, i32) {
    %c0_i32 = arith.constant 0 : i32
    %c0_i32_0 = arith.constant 0 : i32
    %c0_i32_1 = arith.constant 0 : i32
    return %arg0, %c0_i32, %c0_i32_0 : i32, i32, i32
  }
  func.func @transform_10(%arg0: i32) -> (i32, i32, i32) {
    %c0_i32 = arith.constant 0 : i32
    %c0_i32_0 = arith.constant 0 : i32
    %c0_i32_1 = arith.constant 0 : i32
    return %arg0, %c0_i32, %c0_i32_0 : i32, i32, i32
  }
  func.func @transform_11(%arg0: i32) -> (i32, i32, i32) {
    %c0_i32 = arith.constant 0 : i32
    %c0_i32_0 = arith.constant 0 : i32
    %c0_i32_1 = arith.constant 0 : i32
    return %arg0, %c0_i32, %c0_i32_0 : i32, i32, i32
  }
  func.func @transform_12(%arg0: i32) -> (i32, i32, i32) {
    %c0_i32 = arith.constant 0 : i32
    %c0_i32_0 = arith.constant 0 : i32
    %c0_i32_1 = arith.constant 0 : i32
    return %arg0, %c0_i32, %c0_i32_0 : i32, i32, i32
  }
  func.func @transform_13(%arg0: i32) -> (i32, i32, i32) {
    %c0_i32 = arith.constant 0 : i32
    %c0_i32_0 = arith.constant 0 : i32
    %c0_i32_1 = arith.constant 0 : i32
    return %arg0, %c0_i32, %c0_i32_0 : i32, i32, i32
  }
  func.func @transform_14(%arg0: i32) -> (i32, i32, i32) {
    %c0_i32 = arith.constant 0 : i32
    %c0_i32_0 = arith.constant 0 : i32
    %c0_i32_1 = arith.constant 0 : i32
    return %arg0, %c0_i32, %c0_i32_0 : i32, i32, i32
  }
  func.func @transform_15(%arg0: i32) -> (i32, i32, i32) {
    %c0_i32 = arith.constant 0 : i32
    %c0_i32_0 = arith.constant 0 : i32
    %c0_i32_1 = arith.constant 0 : i32
    return %arg0, %c0_i32, %c0_i32_0 : i32, i32, i32
  }
  func.func @transform_16(%arg0: i32) -> (i32, i32) {
    %c0_i32 = arith.constant 0 : i32
    %c0_i32_0 = arith.constant 0 : i32
    %c0_i32_1 = arith.constant 0 : i32
    return %c0_i32, %c0_i32_0 : i32, i32
  }
  func.func @transform_17(%arg0: i32) -> (i32, i32) {
    %c0_i32 = arith.constant 0 : i32
    %c0_i32_0 = arith.constant 0 : i32
    %c0_i32_1 = arith.constant 0 : i32
    return %c0_i32, %c0_i32_0 : i32, i32
  }
  func.func @transform_18(%arg0: i32) -> (i32, i32) {
    %c0_i32 = arith.constant 0 : i32
    %c0_i32_0 = arith.constant 0 : i32
    %c0_i32_1 = arith.constant 0 : i32
    return %c0_i32, %c0_i32_0 : i32, i32
  }
}

</mosaic_0001>

<llo_original>
// kernel: tpu_custom_call.1
$region0: #{tpu_custom_call.1}
  #allocation0 [shape = 'u32[]', space=smem, size = 0x4, offset = 0x4, fixed_abs, tag = 'smem constant byte address 0x4 - core index']
  #allocation1 [shape = 'u32[144,128]{1,0:T(1,128)}', space=vmem, size = 0x12000, scoped, tag = 'internal scratch']
  #allocation2 [shape = 'f32[16,32]{1,0:T(8,128)}', space=vmem, size = 0x2000, scoped, tag = 'scratch operand']
  #allocation3 [shape = 'f32[1,1]{1,0:T(1,128)S(1)}', space=vmem, size = 0x200, scoped, tag = 'scoped memory for tpu_custom_call.1']
  %s0 = inlined_call_operand.vmem [shape: bf16[16,16], index: 0, kind: input, shape index: {}]
  %s1 = inlined_call_operand.vmem [shape: f32[8,32], index: 1, kind: input, shape index: {}]
  %s2 = inlined_call_operand.vmem [shape: bf16[16,32], index: 2, kind: input, shape index: {}]
  %s3 = inlined_call_operand.vmem [shape: f32[1,32], index: 3, kind: input, shape index: {}]
  %s4 = inlined_call_operand.vmem [shape: bf16[2,32,96], index: 4, kind: input, shape index: {}]
  %s5 = inlined_call_operand.vmem [shape: f32[2,1,96], index: 5, kind: input, shape index: {}]
  %s6 = inlined_call_operand.vmem [shape: bf16[2,32,32], index: 6, kind: input, shape index: {}]
  %s7 = inlined_call_operand.vmem [shape: f32[2,1,32], index: 7, kind: input, shape index: {}]
  %s8 = inlined_call_operand.vmem [shape: f32[2,1,32], index: 8, kind: input, shape index: {}]
  %s9 = inlined_call_operand.vmem [shape: f32[2,1,32], index: 9, kind: input, shape index: {}]
  %s10 = inlined_call_operand.vmem [shape: bf16[2,32,128], index: 10, kind: input, shape index: {}]
  %s11 = inlined_call_operand.vmem [shape: f32[2,1,128], index: 11, kind: input, shape index: {}]
  %s12 = inlined_call_operand.vmem [shape: bf16[2,128,32], index: 12, kind: input, shape index: {}]
  %s13 = inlined_call_operand.vmem [shape: f32[2,1,32], index: 13, kind: input, shape index: {}]
  %s14 = inlined_call_operand.vmem [shape: f32[2,1,32], index: 14, kind: input, shape index: {}]
  %s15 = inlined_call_operand.vmem [shape: f32[2,1,32], index: 15, kind: input, shape index: {}]
  %s16 = inlined_call_operand.vmem [shape: f32[1,32], index: 16, kind: input, shape index: {}]
  %s17 = inlined_call_operand.<no memory space> [shape: f32[1,1], index: 17, kind: input, shape index: {}]
  %s18 = inlined_call_operand.hbm [shape: f32[2,128], index: 18, kind: output, shape index: {}]
  %s19 = sld [smem:[#allocation0]]
  $region113: #{tpu_custom_call.1} parent=0
    _
  %s21 = ssub.s32 1, %s19
  %s22 = scalar_select 0, %s21, %s19
  %v23 = vstv %s17
  %24 = vst [vmem:[#allocation3] sm:$0x1] %v23
  $region1: #{tpu_custom_call.1} parent=0
    #allocation4 [shape = 'u8[1024]{0}', space=vmem, size = 0x400, scoped, tag = 'output window, operand 0, single buffered']
    #allocation5 [shape = 's32[2]{0}', space=sflag, size = 0x8, scoped, tag = 'scoped memory for tpu_custom_call.1']
    %25 = vsyncpa [#allocation5], 0
    loop: start=0, step=1, limit=4
    $region2: #{tpu_custom_call.1} parent=1 // loop_pre_header
      _
    $region3: #{tpu_custom_call.1} parent=1 // loop_header
      %s27 = sphi 0, %s31
      %p28 = scmp.ge.s32.totalorder %s27, 4
      %s35 = sphi 0, %s35
      %s37 = sphi 0, %s35
      %s38 = sphi 0, %s37
      %s52 = sphi 0, %s38
      %s56 = sphi 0, %s56
      %s58 = sphi 0, %s56
      %s59 = sphi 0, %s58
      %s73 = sphi 0, %s59
      %s77 = sphi 0, %s77
      %s79 = sphi 0, %s77
      %s80 = sphi 0, %s79
      %s94 = sphi 0, %s80
      %s98 = sphi 0, %s98
      %s100 = sphi 0, %s98
      %s101 = sphi 0, %s100
      %s115 = sphi 0, %s101
      %s121 = sphi 0, %s123
      %s124 = sphi 0, %s121
      %s125 = sphi 0, %s124
      %s141 = sphi 0, %s125
      %s147 = sphi 0, %s149
      %s150 = sphi 0, %s147
      %s151 = sphi 0, %s150
      %s167 = sphi 0, %s151
      %s173 = sphi 0, %s175
      %s176 = sphi 0, %s173
      %s177 = sphi 0, %s176
      %s193 = sphi 0, %s177
      %s199 = sphi 0, %s201
      %s202 = sphi 0, %s199
      %s203 = sphi 0, %s202
      %s219 = sphi 0, %s203
      %s225 = sphi 0, %s227
      %s228 = sphi 0, %s225
      %s229 = sphi 0, %s228
      %s245 = sphi 0, %s229
      %s251 = sphi 0, %s253
      %s254 = sphi 0, %s251
      %s255 = sphi 0, %s254
      %s271 = sphi 0, %s255
      %s277 = sphi 0, %s279
      %s280 = sphi 0, %s277
      %s281 = sphi 0, %s280
      %s297 = sphi 0, %s281
      %s303 = sphi 0, %s305
      %s306 = sphi 0, %s303
      %s307 = sphi 0, %s306
      %s323 = sphi 0, %s307
      %s329 = sphi 0, %s331
      %s332 = sphi 0, %s329
      %s333 = sphi 0, %s332
      %s349 = sphi 0, %s333
      %s355 = sphi 0, %s357
      %s358 = sphi 0, %s355
      %s359 = sphi 0, %s358
      %s375 = sphi 0, %s359
      %s381 = sphi 0, %s383
      %s384 = sphi 0, %s381
      %s385 = sphi 0, %s384
      %s401 = sphi 0, %s385
      %s407 = sphi 0, %s409
      %s410 = sphi 0, %s407
      %s411 = sphi 0, %s410
      %s427 = sphi 0, %s411
      %s431 = sphi 0, %s431
      %s433 = sphi 0, %s431
      %s434 = sphi 0, %s433
      %s448 = sphi 0, %s434
      %s452 = sphi 0, %s452
      %s454 = sphi 0, %s452
      %s455 = sphi 0, %s454
      %s469 = sphi 0, %s455
      %s473 = sphi 0, %s473
      %s475 = sphi 0, %s473
      %s476 = sphi 0, %s475
      %s490 = sphi 0, %s476
    $region4: #{tpu_custom_call.1} parent=1 // loop_header_branch
      %30 = sbr.rel (%p28) target = $region8
    $region5: #{tpu_custom_call.1} parent=1 // loop_body
      %s32 = ssub.s32 %s27, 1
      %s33 = ssub.s32 %s27, 2
      %s34 = sadd.s32 %s27, 1
      %s36 = sadd.s32 %s35, 1
      %p39 = scmp.eq.s32.totalorder %s27, 1
      %p40 = scmp.ne.s32.totalorder %s35, %s37
      %p41 = scmp.eq.s32.totalorder %s27, 0
      %p42 = por %p40, %p41
      %p43 = scmp.ne.s32.totalorder %s35, %s37
      %p44 = scmp.eq.s32.totalorder %s32, 1
      %p45 = por %p43, %p44
      %p46 = scmp.ne.s32.totalorder %s37, %s38
      %p47 = scmp.eq.s32.totalorder %s32, 0
      %p48 = por %p46, %p47
      %p49 = scmp.ne.s32.totalorder %s37, %s38
      %p50 = scmp.eq.s32.totalorder %s33, 1
      %p51 = por %p49, %p50
      %p53 = scmp.ne.s32.totalorder %s38, %s52
      %p54 = scmp.eq.s32.totalorder %s33, 0
      %p55 = por %p53, %p54
      %s57 = sadd.s32 %s56, 1
      %p60 = scmp.eq.s32.totalorder %s27, 1
      %p61 = scmp.ne.s32.totalorder %s56, %s58
      %p62 = scmp.eq.s32.totalorder %s27, 0
      %p63 = por %p61, %p62
      %p64 = scmp.ne.s32.totalorder %s56, %s58
      %p65 = scmp.eq.s32.totalorder %s32, 1
      %p66 = por %p64, %p65
      %p67 = scmp.ne.s32.totalorder %s58, %s59
      %p68 = scmp.eq.s32.totalorder %s32, 0
      %p69 = por %p67, %p68
      %p70 = scmp.ne.s32.totalorder %s58, %s59
      %p71 = scmp.eq.s32.totalorder %s33, 1
      %p72 = por %p70, %p71
      %p74 = scmp.ne.s32.totalorder %s59, %s73
      %p75 = scmp.eq.s32.totalorder %s33, 0
      %p76 = por %p74, %p75
      %s78 = sadd.s32 %s77, 1
      %p81 = scmp.eq.s32.totalorder %s27, 1
      %p82 = scmp.ne.s32.totalorder %s77, %s79
      %p83 = scmp.eq.s32.totalorder %s27, 0
      %p84 = por %p82, %p83
      %p85 = scmp.ne.s32.totalorder %s77, %s79
      %p86 = scmp.eq.s32.totalorder %s32, 1
      %p87 = por %p85, %p86
      %p88 = scmp.ne.s32.totalorder %s79, %s80
      %p89 = scmp.eq.s32.totalorder %s32, 0
      %p90 = por %p88, %p89
      %p91 = scmp.ne.s32.totalorder %s79, %s80
      %p92 = scmp.eq.s32.totalorder %s33, 1
      %p93 = por %p91, %p92
      %p95 = scmp.ne.s32.totalorder %s80, %s94
      %p96 = scmp.eq.s32.totalorder %s33, 0
      %p97 = por %p95, %p96
      %s99 = sadd.s32 %s98, 1
      %p102 = scmp.eq.s32.totalorder %s27, 1
      %p103 = scmp.ne.s32.totalorder %s98, %s100
      %p104 = scmp.eq.s32.totalorder %s27, 0
      %p105 = por %p103, %p104
      %p106 = scmp.ne.s32.totalorder %s98, %s100
      %p107 = scmp.eq.s32.totalorder %s32, 1
      %p108 = por %p106, %p107
      %p109 = scmp.ne.s32.totalorder %s100, %s101
      %p110 = scmp.eq.s32.totalorder %s32, 0
      %p111 = por %p109, %p110
      %p112 = scmp.ne.s32.totalorder %s100, %s101
      %p113 = scmp.eq.s32.totalorder %s33, 1
      %p114 = por %p112, %p113
      %p116 = scmp.ne.s32.totalorder %s101, %s115
      %p117 = scmp.eq.s32.totalorder %s33, 0
      %p118 = por %p116, %p117
      %s119 = ssub.s32 %s27, %s34
      %p120 = scmp.eq.s32.totalorder %s119, 0
      %s122 = sadd.s32 %s121, 1
      %s123 = scalar_select %p120, %s121, %s122
      %p126 = pneg %p120
      %p127 = scmp.eq.s32.totalorder %s27, 1
      %p128 = por %p126, %p127
      %p129 = scmp.ne.s32.totalorder %s121, %s124
      %p130 = scmp.eq.s32.totalorder %s27, 0
      %p131 = por %p129, %p130
      %p132 = scmp.ne.s32.totalorder %s121, %s124
      %p133 = scmp.eq.s32.totalorder %s32, 1
      %p134 = por %p132, %p133
      %p135 = scmp.ne.s32.totalorder %s124, %s125
      %p136 = scmp.eq.s32.totalorder %s32, 0
      %p137 = por %p135, %p136
      %p138 = scmp.ne.s32.totalorder %s124, %s125
      %p139 = scmp.eq.s32.totalorder %s33, 1
      %p140 = por %p138, %p139
      %p142 = scmp.ne.s32.totalorder %s125, %s141
      %p143 = scmp.eq.s32.totalorder %s33, 0
      %p144 = por %p142, %p143
      %s145 = ssub.s32 %s27, %s34
      %p146 = scmp.eq.s32.totalorder %s145, 0
      %s148 = sadd.s32 %s147, 1
      %s149 = scalar_select %p146, %s147, %s148
      %p152 = pneg %p146
      %p153 = scmp.eq.s32.totalorder %s27, 1
      %p154 = por %p152, %p153
      %p155 = scmp.ne.s32.totalorder %s147, %s150
      %p156 = scmp.eq.s32.totalorder %s27, 0
      %p157 = por %p155, %p156
      %p158 = scmp.ne.s32.totalorder %s147, %s150
      %p159 = scmp.eq.s32.totalorder %s32, 1
      %p160 = por %p158, %p159
      %p161 = scmp.ne.s32.totalorder %s150, %s151
      %p162 = scmp.eq.s32.totalorder %s32, 0
      %p163 = por %p161, %p162
      %p164 = scmp.ne.s32.totalorder %s150, %s151
      %p165 = scmp.eq.s32.totalorder %s33, 1
      %p166 = por %p164, %p165
      %p168 = scmp.ne.s32.totalorder %s151, %s167
      %p169 = scmp.eq.s32.totalorder %s33, 0
      %p170 = por %p168, %p169
      %s171 = ssub.s32 %s27, %s34
      %p172 = scmp.eq.s32.totalorder %s171, 0
      %s174 = sadd.s32 %s173, 1
      %s175 = scalar_select %p172, %s173, %s174
      %p178 = pneg %p172
      %p179 = scmp.eq.s32.totalorder %s27, 1
      %p180 = por %p178, %p179
      %p181 = scmp.ne.s32.totalorder %s173, %s176
      %p182 = scmp.eq.s32.totalorder %s27, 0
      %p183 = por %p181, %p182
      %p184 = scmp.ne.s32.totalorder %s173, %s176
      %p185 = scmp.eq.s32.totalorder %s32, 1
      %p186 = por %p184, %p185
      %p187 = scmp.ne.s32.totalorder %s176, %s177
      %p188 = scmp.eq.s32.totalorder %s32, 0
      %p189 = por %p187, %p188
      %p190 = scmp.ne.s32.totalorder %s176, %s177
      %p191 = scmp.eq.s32.totalorder %s33, 1
      %p192 = por %p190, %p191
      %p194 = scmp.ne.s32.totalorder %s177, %s193
      %p195 = scmp.eq.s32.totalorder %s33, 0
      %p196 = por %p194, %p195
      %s197 = ssub.s32 %s27, %s34
      %p198 = scmp.eq.s32.totalorder %s197, 0
      %s200 = sadd.s32 %s199, 1
      %s201 = scalar_select %p198, %s199, %s200
      %p204 = pneg %p198
      %p205 = scmp.eq.s32.totalorder %s27, 1
      %p206 = por %p204, %p205
      %p207 = scmp.ne.s32.totalorder %s199, %s202
      %p208 = scmp.eq.s32.totalorder %s27, 0
      %p209 = por %p207, %p208
      %p210 = scmp.ne.s32.totalorder %s199, %s202
      %p211 = scmp.eq.s32.totalorder %s32, 1
      %p212 = por %p210, %p211
      %p213 = scmp.ne.s32.totalorder %s202, %s203
      %p214 = scmp.eq.s32.totalorder %s32, 0
      %p215 = por %p213, %p214
      %p216 = scmp.ne.s32.totalorder %s202, %s203
      %p217 = scmp.eq.s32.totalorder %s33, 1
      %p218 = por %p216, %p217
      %p220 = scmp.ne.s32.totalorder %s203, %s219
      %p221 = scmp.eq.s32.totalorder %s33, 0
      %p222 = por %p220, %p221
      %s223 = ssub.s32 %s27, %s34
      %p224 = scmp.eq.s32.totalorder %s223, 0
      %s226 = sadd.s32 %s225, 1
      %s227 = scalar_select %p224, %s225, %s226
      %p230 = pneg %p224
      %p231 = scmp.eq.s32.totalorder %s27, 1
      %p232 = por %p230, %p231
      %p233 = scmp.ne.s32.totalorder %s225, %s228
      %p234 = scmp.eq.s32.totalorder %s27, 0
      %p235 = por %p233, %p234
      %p236 = scmp.ne.s32.totalorder %s225, %s228
      %p237 = scmp.eq.s32.totalorder %s32, 1
      %p238 = por %p236, %p237
      %p239 = scmp.ne.s32.totalorder %s228, %s229
      %p240 = scmp.eq.s32.totalorder %s32, 0
      %p241 = por %p239, %p240
      %p242 = scmp.ne.s32.totalorder %s228, %s229
      %p243 = scmp.eq.s32.totalorder %s33, 1
      %p244 = por %p242, %p243
      %p246 = scmp.ne.s32.totalorder %s229, %s245
      %p247 = scmp.eq.s32.totalorder %s33, 0
      %p248 = por %p246, %p247
      %s249 = ssub.s32 %s27, %s34
      %p250 = scmp.eq.s32.totalorder %s249, 0
      %s252 = sadd.s32 %s251, 1
      %s253 = scalar_select %p250, %s251, %s252
      %p256 = pneg %p250
      %p257 = scmp.eq.s32.totalorder %s27, 1
      %p258 = por %p256, %p257
      %p259 = scmp.ne.s32.totalorder %s251, %s254
      %p260 = scmp.eq.s32.totalorder %s27, 0
      %p261 = por %p259, %p260
      %p262 = scmp.ne.s32.totalorder %s251, %s254
      %p263 = scmp.eq.s32.totalorder %s32, 1
      %p264 = por %p262, %p263
      %p265 = scmp.ne.s32.totalorder %s254, %s255
      %p266 = scmp.eq.s32.totalorder %s32, 0
      %p267 = por %p265, %p266
      %p268 = scmp.ne.s32.totalorder %s254, %s255
      %p269 = scmp.eq.s32.totalorder %s33, 1
      %p270 = por %p268, %p269
      %p272 = scmp.ne.s32.totalorder %s255, %s271
      %p273 = scmp.eq.s32.totalorder %s33, 0
      %p274 = por %p272, %p273
      %s275 = ssub.s32 %s27, %s34
      %p276 = scmp.eq.s32.totalorder %s275, 0
      %s278 = sadd.s32 %s277, 1
      %s279 = scalar_select %p276, %s277, %s278
      %p282 = pneg %p276
      %p283 = scmp.eq.s32.totalorder %s27, 1
      %p284 = por %p282, %p283
      %p285 = scmp.ne.s32.totalorder %s277, %s280
      %p286 = scmp.eq.s32.totalorder %s27, 0
      %p287 = por %p285, %p286
      %p288 = scmp.ne.s32.totalorder %s277, %s280
      %p289 = scmp.eq.s32.totalorder %s32, 1
      %p290 = por %p288, %p289
      %p291 = scmp.ne.s32.totalorder %s280, %s281
      %p292 = scmp.eq.s32.totalorder %s32, 0
      %p293 = por %p291, %p292
      %p294 = scmp.ne.s32.totalorder %s280, %s281
      %p295 = scmp.eq.s32.totalorder %s33, 1
      %p296 = por %p294, %p295
      %p298 = scmp.ne.s32.totalorder %s281, %s297
      %p299 = scmp.eq.s32.totalorder %s33, 0
      %p300 = por %p298, %p299
      %s301 = ssub.s32 %s27, %s34
      %p302 = scmp.eq.s32.totalorder %s301, 0
      %s304 = sadd.s32 %s303, 1
      %s305 = scalar_select %p302, %s303, %s304
      %p308 = pneg %p302
      %p309 = scmp.eq.s32.totalorder %s27, 1
      %p310 = por %p308, %p309
      %p311 = scmp.ne.s32.totalorder %s303, %s306
      %p312 = scmp.eq.s32.totalorder %s27, 0
      %p313 = por %p311, %p312
      %p314 = scmp.ne.s32.totalorder %s303, %s306
      %p315 = scmp.eq.s32.totalorder %s32, 1
      %p316 = por %p314, %p315
      %p317 = scmp.ne.s32.totalorder %s306, %s307
      %p318 = scmp.eq.s32.totalorder %s32, 0
      %p319 = por %p317, %p318
      %p320 = scmp.ne.s32.totalorder %s306, %s307
      %p321 = scmp.eq.s32.totalorder %s33, 1
      %p322 = por %p320, %p321
      %p324 = scmp.ne.s32.totalorder %s307, %s323
      %p325 = scmp.eq.s32.totalorder %s33, 0
      %p326 = por %p324, %p325
      %s327 = ssub.s32 %s27, %s34
      %p328 = scmp.eq.s32.totalorder %s327, 0
      %s330 = sadd.s32 %s329, 1
      %s331 = scalar_select %p328, %s329, %s330
      %p334 = pneg %p328
      %p335 = scmp.eq.s32.totalorder %s27, 1
      %p336 = por %p334, %p335
      %p337 = scmp.ne.s32.totalorder %s329, %s332
      %p338 = scmp.eq.s32.totalorder %s27, 0
      %p339 = por %p337, %p338
      %p340 = scmp.ne.s32.totalorder %s329, %s332
      %p341 = scmp.eq.s32.totalorder %s32, 1
      %p342 = por %p340, %p341
      %p343 = scmp.ne.s32.totalorder %s332, %s333
      %p344 = scmp.eq.s32.totalorder %s32, 0
      %p345 = por %p343, %p344
      %p346 = scmp.ne.s32.totalorder %s332, %s333
      %p347 = scmp.eq.s32.totalorder %s33, 1
      %p348 = por %p346, %p347
      %p350 = scmp.ne.s32.totalorder %s333, %s349
      %p351 = scmp.eq.s32.totalorder %s33, 0
      %p352 = por %p350, %p351
      %s353 = ssub.s32 %s27, %s34
      %p354 = scmp.eq.s32.totalorder %s353, 0
      %s356 = sadd.s32 %s355, 1
      %s357 = scalar_select %p354, %s355, %s356
      %p360 = pneg %p354
      %p361 = scmp.eq.s32.totalorder %s27, 1
      %p362 = por %p360, %p361
      %p363 = scmp.ne.s32.totalorder %s355, %s358
      %p364 = scmp.eq.s32.totalorder %s27, 0
      %p365 = por %p363, %p364
      %p366 = scmp.ne.s32.totalorder %s355, %s358
      %p367 = scmp.eq.s32.totalorder %s32, 1
      %p368 = por %p366, %p367
      %p369 = scmp.ne.s32.totalorder %s358, %s359
      %p370 = scmp.eq.s32.totalorder %s32, 0
      %p371 = por %p369, %p370
      %p372 = scmp.ne.s32.totalorder %s358, %s359
      %p373 = scmp.eq.s32.totalorder %s33, 1
      %p374 = por %p372, %p373
      %p376 = scmp.ne.s32.totalorder %s359, %s375
      %p377 = scmp.eq.s32.totalorder %s33, 0
      %p378 = por %p376, %p377
      %s379 = ssub.s32 %s27, %s34
      %p380 = scmp.eq.s32.totalorder %s379, 0
      %s382 = sadd.s32 %s381, 1
      %s383 = scalar_select %p380, %s381, %s382
      %p386 = pneg %p380
      %p387 = scmp.eq.s32.totalorder %s27, 1
      %p388 = por %p386, %p387
      %p389 = scmp.ne.s32.totalorder %s381, %s384
      %p390 = scmp.eq.s32.totalorder %s27, 0
      %p391 = por %p389, %p390
      %p392 = scmp.ne.s32.totalorder %s381, %s384
      %p393 = scmp.eq.s32.totalorder %s32, 1
      %p394 = por %p392, %p393
      %p395 = scmp.ne.s32.totalorder %s384, %s385
      %p396 = scmp.eq.s32.totalorder %s32, 0
      %p397 = por %p395, %p396
      %p398 = scmp.ne.s32.totalorder %s384, %s385
      %p399 = scmp.eq.s32.totalorder %s33, 1
      %p400 = por %p398, %p399
      %p402 = scmp.ne.s32.totalorder %s385, %s401
      %p403 = scmp.eq.s32.totalorder %s33, 0
      %p404 = por %p402, %p403
      %s405 = ssub.s32 %s27, %s34
      %p406 = scmp.eq.s32.totalorder %s405, 0
      %s408 = sadd.s32 %s407, 1
      %s409 = scalar_select %p406, %s407, %s408
      %p412 = pneg %p406
      %p413 = scmp.eq.s32.totalorder %s27, 1
      %p414 = por %p412, %p413
      %p415 = scmp.ne.s32.totalorder %s407, %s410
      %p416 = scmp.eq.s32.totalorder %s27, 0
      %p417 = por %p415, %p416
      %p418 = scmp.ne.s32.totalorder %s407, %s410
      %p419 = scmp.eq.s32.totalorder %s32, 1
      %p420 = por %p418, %p419
      %p421 = scmp.ne.s32.totalorder %s410, %s411
      %p422 = scmp.eq.s32.totalorder %s32, 0
      %p423 = por %p421, %p422
      %p424 = scmp.ne.s32.totalorder %s410, %s411
      %p425 = scmp.eq.s32.totalorder %s33, 1
      %p426 = por %p424, %p425
      %p428 = scmp.ne.s32.totalorder %s411, %s427
      %p429 = scmp.eq.s32.totalorder %s33, 0
      %p430 = por %p428, %p429
      %s432 = sadd.s32 %s431, 1
      %p435 = scmp.eq.s32.totalorder %s27, 1
      %p436 = scmp.ne.s32.totalorder %s431, %s433
      %p437 = scmp.eq.s32.totalorder %s27, 0
      %p438 = por %p436, %p437
      %p439 = scmp.ne.s32.totalorder %s431, %s433
      %p440 = scmp.eq.s32.totalorder %s32, 1
      %p441 = por %p439, %p440
      %p442 = scmp.ne.s32.totalorder %s433, %s434
      %p443 = scmp.eq.s32.totalorder %s32, 0
      %p444 = por %p442, %p443
      %p445 = scmp.ne.s32.totalorder %s433, %s434
      %p446 = scmp.eq.s32.totalorder %s33, 1
      %p447 = por %p445, %p446
      %p449 = scmp.ne.s32.totalorder %s434, %s448
      %p450 = scmp.eq.s32.totalorder %s33, 0
      %p451 = por %p449, %p450
      %s453 = sadd.s32 %s452, 1
      %p456 = scmp.eq.s32.totalorder %s27, 1
      %p457 = scmp.ne.s32.totalorder %s452, %s454
      %p458 = scmp.eq.s32.totalorder %s27, 0
      %p459 = por %p457, %p458
      %p460 = scmp.ne.s32.totalorder %s452, %s454
      %p461 = scmp.eq.s32.totalorder %s32, 1
      %p462 = por %p460, %p461
      %p463 = scmp.ne.s32.totalorder %s454, %s455
      %p464 = scmp.eq.s32.totalorder %s32, 0
      %p465 = por %p463, %p464
      %p466 = scmp.ne.s32.totalorder %s454, %s455
      %p467 = scmp.eq.s32.totalorder %s33, 1
      %p468 = por %p466, %p467
      %p470 = scmp.ne.s32.totalorder %s455, %s469
      %p471 = scmp.eq.s32.totalorder %s33, 0
      %p472 = por %p470, %p471
      %s474 = sadd.s32 %s473, 1
      %p477 = scmp.eq.s32.totalorder %s27, 1
      %p478 = scmp.ne.s32.totalorder %s473, %s475
      %p479 = scmp.eq.s32.totalorder %s27, 0
      %p480 = por %p478, %p479
      %p481 = scmp.ne.s32.totalorder %s473, %s475
      %p482 = scmp.eq.s32.totalorder %s32, 1
      %p483 = por %p481, %p482
      %p484 = scmp.ne.s32.totalorder %s475, %s476
      %p485 = scmp.eq.s32.totalorder %s32, 0
      %p486 = por %p484, %p485
      %p487 = scmp.ne.s32.totalorder %s475, %s476
      %p488 = scmp.eq.s32.totalorder %s33, 1
      %p489 = por %p487, %p488
      %p491 = scmp.ne.s32.totalorder %s476, %s490
      %p492 = scmp.eq.s32.totalorder %s33, 0
      %p493 = por %p491, %p492
      %p494 = scmp.le.s32.totalorder 1, %s27
      %p495 = scmp.lt.s32.totalorder %s27, 3
      %p496 = pnand %p494, %p495
      %p497 = pneg %p496
      // Predicated region
      $region9: #{tpu_custom_call.1} parent=5 // pred_check
        _
      $region10: #{tpu_custom_call.1} parent=5 // pred_check_branch
        %499 = sbr.rel (%p496) target = $region12
      $region11: #{tpu_custom_call.1} parent=5 // pred_region
        %s500 = ssub.s32 %s27, 1
        // Predicated region
        $region13: #{tpu_custom_call.1} parent=11 // pred_check
          %p501 = pneg %p48
        $region14: #{tpu_custom_call.1} parent=11 // pred_check_branch
          %503 = sbr.rel (%p501) target = $region16
        $region15: #{tpu_custom_call.1} parent=11 // pred_region
          _
        $region16: #{tpu_custom_call.1} parent=11 // pred_fallthru
          _
        // Predicated region
        $region17: #{tpu_custom_call.1} parent=11 // pred_check
          %p504 = pneg %p69
        $region18: #{tpu_custom_call.1} parent=11 // pred_check_branch
          %506 = sbr.rel (%p504) target = $region20
        $region19: #{tpu_custom_call.1} parent=11 // pred_region
          _
        $region20: #{tpu_custom_call.1} parent=11 // pred_fallthru
          _
        // Predicated region
        $region21: #{tpu_custom_call.1} parent=11 // pred_check
          %p507 = pneg %p90
        $region22: #{tpu_custom_call.1} parent=11 // pred_check_branch
          %509 = sbr.rel (%p507) target = $region24
        $region23: #{tpu_custom_call.1} parent=11 // pred_region
          _
        $region24: #{tpu_custom_call.1} parent=11 // pred_fallthru
          _
        // Predicated region
        $region25: #{tpu_custom_call.1} parent=11 // pred_check
          %p510 = pneg %p111
        $region26: #{tpu_custom_call.1} parent=11 // pred_check_branch
          %512 = sbr.rel (%p510) target = $region28
        $region27: #{tpu_custom_call.1} parent=11 // pred_region
          _
        $region28: #{tpu_custom_call.1} parent=11 // pred_fallthru
          _
        // Predicated region
        $region29: #{tpu_custom_call.1} parent=11 // pred_check
          %p513 = pneg %p444
        $region30: #{tpu_custom_call.1} parent=11 // pred_check_branch
          %515 = sbr.rel (%p513) target = $region32
        $region31: #{tpu_custom_call.1} parent=11 // pred_region
          _
        $region32: #{tpu_custom_call.1} parent=11 // pred_fallthru
          _
        // Predicated region
        $region33: #{tpu_custom_call.1} parent=11 // pred_check
          %p516 = pneg %p465
        $region34: #{tpu_custom_call.1} parent=11 // pred_check_branch
          %518 = sbr.rel (%p516) target = $region36
        $region35: #{tpu_custom_call.1} parent=11 // pred_region
          _
        $region36: #{tpu_custom_call.1} parent=11 // pred_fallthru
          _
      $region12: #{tpu_custom_call.1} parent=5 // pred_fallthru
        _
      %p519 = scmp.lt.s32.totalorder %s27, 2
      // Predicated region
      $region37: #{tpu_custom_call.1} parent=5 // pred_check
        %p520 = pneg %p519
      $region38: #{tpu_custom_call.1} parent=5 // pred_check_branch
        %522 = sbr.rel (%p520) target = $region40
      $region39: #{tpu_custom_call.1} parent=5 // pred_region
        // Predicated region
        $region41: #{tpu_custom_call.1} parent=39 // pred_check
          %p523 = pneg %p131
        $region42: #{tpu_custom_call.1} parent=39 // pred_check_branch
          %525 = sbr.rel (%p523) target = $region44
        $region43: #{tpu_custom_call.1} parent=39 // pred_region
          %p526 = scmp.lt.s32.totalorder %s27, 1
          %s527 = scalar_select %p526, %s27, 1
          %s528 = smul.addr %s527, 4
          %s529 = smul.addr %s528, 4
          %s530 = scalar_lea.vmem %s4, %s529
        $region44: #{tpu_custom_call.1} parent=39 // pred_fallthru
          _
        // Predicated region
        $region45: #{tpu_custom_call.1} parent=39 // pred_check
          %p531 = pneg %p157
        $region46: #{tpu_custom_call.1} parent=39 // pred_check_branch
          %533 = sbr.rel (%p531) target = $region48
        $region47: #{tpu_custom_call.1} parent=39 // pred_region
          %p534 = scmp.lt.s32.totalorder %s27, 1
          %s535 = scalar_select %p534, %s27, 1
          %s536 = scalar_lea.vmem %s5, %s535
        $region48: #{tpu_custom_call.1} parent=39 // pred_fallthru
          _
        // Predicated region
        $region49: #{tpu_custom_call.1} parent=39 // pred_check
          %p537 = pneg %p183
        $region50: #{tpu_custom_call.1} parent=39 // pred_check_branch
          %539 = sbr.rel (%p537) target = $region52
        $region51: #{tpu_custom_call.1} parent=39 // pred_region
          %p540 = scmp.lt.s32.totalorder %s27, 1
          %s541 = scalar_select %p540, %s27, 1
          %s542 = smul.addr %s541, 4
          %s543 = smul.addr %s542, 4
          %s544 = scalar_lea.vmem %s6, %s543
        $region52: #{tpu_custom_call.1} parent=39 // pred_fallthru
          _
        // Predicated region
        $region53: #{tpu_custom_call.1} parent=39 // pred_check
          %p545 = pneg %p209
        $region54: #{tpu_custom_call.1} parent=39 // pred_check_branch
          %547 = sbr.rel (%p545) target = $region56
        $region55: #{tpu_custom_call.1} parent=39 // pred_region
          %p548 = scmp.lt.s32.totalorder %s27, 1
          %s549 = scalar_select %p548, %s27, 1
          %s550 = scalar_lea.vmem %s7, %s549
        $region56: #{tpu_custom_call.1} parent=39 // pred_fallthru
          _
        // Predicated region
        $region57: #{tpu_custom_call.1} parent=39 // pred_check
          %p551 = pneg %p235
        $region58: #{tpu_custom_call.1} parent=39 // pred_check_branch
          %553 = sbr.rel (%p551) target = $region60
        $region59: #{tpu_custom_call.1} parent=39 // pred_region
          %p554 = scmp.lt.s32.totalorder %s27, 1
          %s555 = scalar_select %p554, %s27, 1
          %s556 = scalar_lea.vmem %s8, %s555
        $region60: #{tpu_custom_call.1} parent=39 // pred_fallthru
          _
        // Predicated region
        $region61: #{tpu_custom_call.1} parent=39 // pred_check
          %p557 = pneg %p261
        $region62: #{tpu_custom_call.1} parent=39 // pred_check_branch
          %559 = sbr.rel (%p557) target = $region64
        $region63: #{tpu_custom_call.1} parent=39 // pred_region
          %p560 = scmp.lt.s32.totalorder %s27, 1
          %s561 = scalar_select %p560, %s27, 1
          %s562 = scalar_lea.vmem %s9, %s561
        $region64: #{tpu_custom_call.1} parent=39 // pred_fallthru
          _
        // Predicated region
        $region65: #{tpu_custom_call.1} parent=39 // pred_check
          %p563 = pneg %p287
        $region66: #{tpu_custom_call.1} parent=39 // pred_check_branch
          %565 = sbr.rel (%p563) target = $region68
        $region67: #{tpu_custom_call.1} parent=39 // pred_region
          %p566 = scmp.lt.s32.totalorder %s27, 1
          %s567 = scalar_select %p566, %s27, 1
          %s568 = smul.addr %s567, 4
          %s569 = smul.addr %s568, 4
          %s570 = scalar_lea.vmem %s10, %s569
        $region68: #{tpu_custom_call.1} parent=39 // pred_fallthru
          _
        // Predicated region
        $region69: #{tpu_custom_call.1} parent=39 // pred_check
          %p571 = pneg %p313
        $region70: #{tpu_custom_call.1} parent=39 // pred_check_branch
          %573 = sbr.rel (%p571) target = $region72
        $region71: #{tpu_custom_call.1} parent=39 // pred_region
          %p574 = scmp.lt.s32.totalorder %s27, 1
          %s575 = scalar_select %p574, %s27, 1
          %s576 = scalar_lea.vmem %s11, %s575
        $region72: #{tpu_custom_call.1} parent=39 // pred_fallthru
          _
        // Predicated region
        $region73: #{tpu_custom_call.1} parent=39 // pred_check
          %p577 = pneg %p339
        $region74: #{tpu_custom_call.1} parent=39 // pred_check_branch
          %579 = sbr.rel (%p577) target = $region76
        $region75: #{tpu_custom_call.1} parent=39 // pred_region
          %p580 = scmp.lt.s32.totalorder %s27, 1
          %s581 = scalar_select %p580, %s27, 1
          %s582 = smul.addr %s581, 16
          %s583 = smul.addr %s582, 4
          %s584 = scalar_lea.vmem %s12, %s583
        $region76: #{tpu_custom_call.1} parent=39 // pred_fallthru
          _
        // Predicated region
        $region77: #{tpu_custom_call.1} parent=39 // pred_check
          %p585 = pneg %p365
        $region78: #{tpu_custom_call.1} parent=39 // pred_check_branch
          %587 = sbr.rel (%p585) target = $region80
        $region79: #{tpu_custom_call.1} parent=39 // pred_region
          %p588 = scmp.lt.s32.totalorder %s27, 1
          %s589 = scalar_select %p588, %s27, 1
          %s590 = scalar_lea.vmem %s13, %s589
        $region80: #{tpu_custom_call.1} parent=39 // pred_fallthru
          _
        // Predicated region
        $region81: #{tpu_custom_call.1} parent=39 // pred_check
          %p591 = pneg %p391
        $region82: #{tpu_custom_call.1} parent=39 // pred_check_branch
          %593 = sbr.rel (%p591) target = $region84
        $region83: #{tpu_custom_call.1} parent=39 // pred_region
          %p594 = scmp.lt.s32.totalorder %s27, 1
          %s595 = scalar_select %p594, %s27, 1
          %s596 = scalar_lea.vmem %s14, %s595
        $region84: #{tpu_custom_call.1} parent=39 // pred_fallthru
          _
        // Predicated region
        $region85: #{tpu_custom_call.1} parent=39 // pred_check
          %p597 = pneg %p417
        $region86: #{tpu_custom_call.1} parent=39 // pred_check_branch
          %599 = sbr.rel (%p597) target = $region88
        $region87: #{tpu_custom_call.1} parent=39 // pred_region
          %p600 = scmp.lt.s32.totalorder %s27, 1
          %s601 = scalar_select %p600, %s27, 1
          %s602 = scalar_lea.vmem %s15, %s601
        $region88: #{tpu_custom_call.1} parent=39 // pred_fallthru
          _
      $region40: #{tpu_custom_call.1} parent=5 // pred_fallthru
        _
      %p603 = scmp.le.s32.totalorder 1, %s27
      %p604 = scmp.lt.s32.totalorder %s27, 3
      %p605 = pnand %p603, %p604
      %p606 = pneg %p605
      // Predicated region
      $region89: #{tpu_custom_call.1} parent=5 // pred_check
        _
      $region90: #{tpu_custom_call.1} parent=5 // pred_check_branch
        %608 = sbr.rel (%p605) target = $region92
      $region91: #{tpu_custom_call.1} parent=5 // pred_region
        %s609 = ssub.s32 %s27, 1
        %p610 = pneg %p48
        %p611 = pneg %p45
        %p612 = pneg %p69
        %p613 = pneg %p66
        %p614 = pneg %p90
        %p615 = pneg %p87
        %p616 = pneg %p111
        %p617 = pneg %p108
        %p618 = scmp.lt.s32.totalorder %s32, 1
        %s619 = scalar_select %p618, %s32, 1
        %s620 = smul.addr %s619, 4
        %s621 = smul.addr %s620, 4
        %s622 = scalar_lea.vmem %s4, %s621
        %p623 = pneg %p137
        %p624 = pneg %p134
        %p625 = scmp.lt.s32.totalorder %s32, 1
        %s626 = scalar_select %p625, %s32, 1
        %s627 = scalar_lea.vmem %s5, %s626
        %p628 = pneg %p163
        %p629 = pneg %p160
        %p630 = scmp.lt.s32.totalorder %s32, 1
        %s631 = scalar_select %p630, %s32, 1
        %s632 = smul.addr %s631, 4
        %s633 = smul.addr %s632, 4
        %s634 = scalar_lea.vmem %s6, %s633
        %p635 = pneg %p189
        %p636 = pneg %p186
        %p637 = scmp.lt.s32.totalorder %s32, 1
        %s638 = scalar_select %p637, %s32, 1
        %s639 = scalar_lea.vmem %s7, %s638
        %p640 = pneg %p215
        %p641 = pneg %p212
        %p642 = scmp.lt.s32.totalorder %s32, 1
        %s643 = scalar_select %p642, %s32, 1
        %s644 = scalar_lea.vmem %s8, %s643
        %p645 = pneg %p241
        %p646 = pneg %p238
        %p647 = scmp.lt.s32.totalorder %s32, 1
        %s648 = scalar_select %p647, %s32, 1
        %s649 = scalar_lea.vmem %s9, %s648
        %p650 = pneg %p267
        %p651 = pneg %p264
        %p652 = scmp.lt.s32.totalorder %s32, 1
        %s653 = scalar_select %p652, %s32, 1
        %s654 = smul.addr %s653, 4
        %s655 = smul.addr %s654, 4
        %s656 = scalar_lea.vmem %s10, %s655
        %p657 = pneg %p293
        %p658 = pneg %p290
        %p659 = scmp.lt.s32.totalorder %s32, 1
        %s660 = scalar_select %p659, %s32, 1
        %s661 = scalar_lea.vmem %s11, %s660
        %p662 = pneg %p319
        %p663 = pneg %p316
        %p664 = scmp.lt.s32.totalorder %s32, 1
        %s665 = scalar_select %p664, %s32, 1
        %s666 = smul.addr %s665, 16
        %s667 = smul.addr %s666, 4
        %s668 = scalar_lea.vmem %s12, %s667
        %p669 = pneg %p345
        %p670 = pneg %p342
        %p671 = scmp.lt.s32.totalorder %s32, 1
        %s672 = scalar_select %p671, %s32, 1
        %s673 = scalar_lea.vmem %s13, %s672
        %p674 = pneg %p371
        %p675 = pneg %p368
        %p676 = scmp.lt.s32.totalorder %s32, 1
        %s677 = scalar_select %p676, %s32, 1
        %s678 = scalar_lea.vmem %s14, %s677
        %p679 = pneg %p397
        %p680 = pneg %p394
        %p681 = scmp.lt.s32.totalorder %s32, 1
        %s682 = scalar_select %p681, %s32, 1
        %s683 = scalar_lea.vmem %s15, %s682
        %p684 = pneg %p423
        %p685 = pneg %p420
        %p686 = pneg %p444
        %p687 = pneg %p441
        %p688 = pneg %p465
        %p689 = pneg %p462
        %p690 = pneg %p486
        %p691 = pneg %p483
        %p692 = scmp.lt.s32.totalorder %s32, 1
        %s693 = scalar_select %p692, %s32, 1
        %s694 = smul.addr %s693, 4
        %s695 = smul.addr %s694, 4
        %s696 = scalar_lea.vmem %s4, %s695
        %p697 = scmp.lt.s32.totalorder %s32, 1
        %s698 = scalar_select %p697, %s32, 1
        %s699 = scalar_lea.vmem %s5, %s698
        %p700 = scmp.lt.s32.totalorder %s32, 1
        %s701 = scalar_select %p700, %s32, 1
        %s702 = smul.addr %s701, 4
        %s703 = smul.addr %s702, 4
        %s704 = scalar_lea.vmem %s6, %s703
        %p705 = scmp.lt.s32.totalorder %s32, 1
        %s706 = scalar_select %p705, %s32, 1
        %s707 = scalar_lea.vmem %s7, %s706
        %p708 = scmp.lt.s32.totalorder %s32, 1
        %s709 = scalar_select %p708, %s32, 1
        %s710 = scalar_lea.vmem %s8, %s709
        %p711 = scmp.lt.s32.totalorder %s32, 1
        %s712 = scalar_select %p711, %s32, 1
        %s713 = scalar_lea.vmem %s9, %s712
        %p714 = scmp.lt.s32.totalorder %s32, 1
        %s715 = scalar_select %p714, %s32, 1
        %s716 = smul.addr %s715, 4
        %s717 = smul.addr %s716, 4
        %s718 = scalar_lea.vmem %s10, %s717
        %p719 = scmp.lt.s32.totalorder %s32, 1
        %s720 = scalar_select %p719, %s32, 1
        %s721 = scalar_lea.vmem %s11, %s720
        %p722 = scmp.lt.s32.totalorder %s32, 1
        %s723 = scalar_select %p722, %s32, 1
        %s724 = smul.addr %s723, 16
        %s725 = smul.addr %s724, 4
        %s726 = scalar_lea.vmem %s12, %s725
        %p727 = scmp.lt.s32.totalorder %s32, 1
        %s728 = scalar_select %p727, %s32, 1
        %s729 = scalar_lea.vmem %s13, %s728
        %p730 = scmp.lt.s32.totalorder %s32, 1
        %s731 = scalar_select %p730, %s32, 1
        %s732 = scalar_lea.vmem %s14, %s731
        %p733 = scmp.lt.s32.totalorder %s32, 1
        %s734 = scalar_select %p733, %s32, 1
        %s735 = scalar_lea.vmem %s15, %s734
        %p737 = scmp.eq.s32.totalorder %s32, 0
        // Predicated region
        $region93: #{tpu_custom_call.1} parent=91 // pred_check
          %p738 = pneg %p737
        $region94: #{tpu_custom_call.1} parent=91 // pred_check_branch
          %740 = sbr.rel (%p738) target = $region96
        $region95: #{tpu_custom_call.1} parent=91 // pred_region
          %v741 = vld [vmem:[%s0] sm:$0xf]
          %v742 = vld [vmem:[%s0 + $0x4] sm:$0xf]
          %v743 = vld [vmem:[%s2] sm:$0xf]
          %v744 = vld [vmem:[%s2 + $0x4] sm:$0xf]
          %v745 = vld [vmem:[%s3] sm:$0x1]
          %v747 = vlaneseq
          %v748 = vshrl.u32 %v747, 7
          %v749 = vsub.s32 0, %v748
          %v750 = vrot.slane %v745, %v749
          %v754 = vunpack.c.l.b16 %v741
          %v755 = vunpack.c.l.b16 %v742
          %v756 = vpack.c.b16 %v755, %v754
          %v759 = vunpack.c.l.b16 %v743
          %v760 = vunpack.c.l.b16 %v744
          %v761 = vpack.c.b16 %v760, %v759
          %vm763 = vcmask 130048
          %v765 = vsel %vm763, %v756, 0
          %767 = vmatprep.subr.bf16.mxu0 0
          %768 = vmatpush1.bf16.msra.mxu0 %v761
          %769 = vmatprep.subr.bf16.mxu0 0
          %770 = vmatpush1.bf16.msra.mxu0 0
          %771 = vmatprep.subr.bf16.mxu0 0
          %772 = vmatpush1.bf16.msra.mxu0 0
          %773 = vmatprep.subr.bf16.mxu0 0
          %774 = vmatpush1.bf16.msra.mxu0 0
          %775 = vmatprep.subr.bf16.mxu0 0
          %776 = vmatpush1.bf16.msra.mxu0 0
          %777 = vmatprep.subr.bf16.mxu0 0
          %778 = vmatpush1.bf16.msra.mxu0 0
          %779 = vmatprep.subr.bf16.mxu0 0
          %780 = vmatpush1.bf16.msra.mxu0 0
          %781 = vmatprep.subr.bf16.mxu0 0
          %782 = vmatpush1.bf16.msra.mxu0 0
          %783 = vmatprep.subr.bf16.mxu0 0
          %784 = vmatpush1.bf16.msra.mxu0 0
          %785 = vmatprep.subr.bf16.mxu0 0
          %786 = vmatpush1.bf16.msra.mxu0 0
          %787 = vmatprep.subr.bf16.mxu0 0
          %788 = vmatpush1.bf16.msra.mxu0 0
          %789 = vmatprep.subr.bf16.mxu0 0
          %790 = vmatpush1.bf16.msra.mxu0 0
          %791 = vmatprep.subr.bf16.mxu0 0
          %792 = vmatpush1.bf16.msra.mxu0 0
          %793 = vmatprep.subr.bf16.mxu0 0
          %794 = vmatpush1.bf16.msra.mxu0 0
          %795 = vmatprep.subr.bf16.mxu0 0
          %796 = vmatpush1.bf16.msra.mxu0 0
          %797 = vmatprep.subr.bf16.mxu0 0
          %798 = vmatpush1.bf16.msra.mxu0 0
          %799 = vmatprep.mubr.bf16.mxu0 0
          %800 = vmatmul.mubr.bf16.gmra.mrb[0].mxu0 %v765
          %v801 = vpop.f32.mrb[0].mxu0
          %v802 = vadd.f32 %v750, %v801
          %v803 = vpop.f32.mrb[0].mxu0
          %v804 = vpop.f32.mrb[0].mxu0
          %v805 = vadd.f32 %v750, %v804
          %v806 = vpop.f32.mrb[0].mxu0
          %807 = vdwg.mxu0
          %v808 = vld [vmem:[%s1] sm:$0xff]
          %v809 = vadd.f32 %v802, %v808
          %v810 = vadd.f32 %v805, %v808
          %vm811 = vcmask 261120
          %812 = vst.msk [vmem:[#allocation2] sm:$0xff] %vm811, %v809
          %813 = vst.msk [vmem:[#allocation2 + $0x8] sm:$0xff] %vm811, %v810
        $region96: #{tpu_custom_call.1} parent=91 // pred_fallthru
          _
        %v814 = vld [vmem:[#allocation2] sm:$0xff]
        %v815 = vld [vmem:[#allocation2 + $0x8] sm:$0xff]
        %v816 = vpack.c.bf16 %v815, %v814
        %v817 = vld [vmem:[%s696] sm:$0xf]
        %v818 = vld [vmem:[%s696 + $0x4] sm:$0xf]
        %v819 = vld [vmem:[%s696 + $0x8] sm:$0xf]
        %v820 = vld [vmem:[%s696 + $0xc] sm:$0xf]
        %v821 = vld [vmem:[%s699] sm:$0x1]
        %v823 = vlaneseq
        %v824 = vshrl.u32 %v823, 7
        %v825 = vsub.s32 0, %v824
        %v826 = vrot.slane %v821, %v825
        %v832 = vunpack.c.l.b16 %v817
        %v833 = vunpack.c.l.b16 %v818
        %v834 = vunpack.c.l.b16 %v819
        %v835 = vunpack.c.l.b16 %v820
        %v836 = vpack.c.b16 %v833, %v832
        %v837 = vpack.c.b16 %v835, %v834
        %vm840 = vcmask 261120
        %v842 = vsel %vm840, %v816, 0
        %844 = vmatprep.subr.bf16.mxu0 0
        %845 = vmatpush1.bf16.msra.mxu0 %v836
        %846 = vmatprep.subr.bf16.mxu0 0
        %847 = vmatpush1.bf16.msra.mxu0 %v837
        %848 = vmatprep.subr.bf16.mxu0 0
        %849 = vmatpush1.bf16.msra.mxu0 0
        %850 = vmatprep.subr.bf16.mxu0 0
        %851 = vmatpush1.bf16.msra.mxu0 0
        %852 = vmatprep.subr.bf16.mxu0 0
        %853 = vmatpush1.bf16.msra.mxu0 0
        %854 = vmatprep.subr.bf16.mxu0 0
        %855 = vmatpush1.bf16.msra.mxu0 0
        %856 = vmatprep.subr.bf16.mxu0 0
        %857 = vmatpush1.bf16.msra.mxu0 0
        %858 = vmatprep.subr.bf16.mxu0 0
        %859 = vmatpush1.bf16.msra.mxu0 0
        %860 = vmatprep.subr.bf16.mxu0 0
        %861 = vmatpush1.bf16.msra.mxu0 0
        %862 = vmatprep.subr.bf16.mxu0 0
        %863 = vmatpush1.bf16.msra.mxu0 0
        %864 = vmatprep.subr.bf16.mxu0 0
        %865 = vmatpush1.bf16.msra.mxu0 0
        %866 = vmatprep.subr.bf16.mxu0 0
        %867 = vmatpush1.bf16.msra.mxu0 0
        %868 = vmatprep.subr.bf16.mxu0 0
        %869 = vmatpush1.bf16.msra.mxu0 0
        %870 = vmatprep.subr.bf16.mxu0 0
        %871 = vmatpush1.bf16.msra.mxu0 0
        %872 = vmatprep.subr.bf16.mxu0 0
        %873 = vmatpush1.bf16.msra.mxu0 0
        %874 = vmatprep.subr.bf16.mxu0 0
        %875 = vmatpush1.bf16.msra.mxu0 0
        %876 = vmatprep.mubr.bf16.mxu0 0
        %877 = vmatmul.mubr.bf16.gmra.mrb[0].mxu0 %v842
        %v878 = vpop.f32.mrb[0].mxu0
        %v879 = vadd.f32 %v826, %v878
        %v880 = vpop.f32.mrb[0].mxu0
        %v881 = vpop.f32.mrb[0].mxu0
        %v882 = vadd.f32 %v826, %v881
        %v883 = vpop.f32.mrb[0].mxu0
        %884 = vdwg.mxu0
        %v885 = vpack.c.bf16 %v882, %v879
        %v887 = vunpack.c.l.b16 %v885
        %v888 = vunpack.c.h.b16 %v885
        %v889 = vpack.c.b16 %v887, %v887
        %v890 = vpack.c.b16 %v888, %v888
        %891 = vrot.lane.b32.xlu0 %v889, 96
        %v892 = vpop.permute.xlu0 %891
        %vm893 = vcmask 64512
        %v895 = vsel %vm893, %v889, 0
        %v898 = vsel %vm893, %v892, 0
        %900 = vmatprep.subr.bf16.mxu0 0
        %901 = vmatpush1.bf16.xpose.msra.mxu0 %v898
        %902 = vmatprep.subr.bf16.mxu0 0
        %903 = vmatpush1.bf16.xpose.msra.mxu0 0
        %904 = vmatprep.subr.bf16.mxu0 0
        %905 = vmatpush1.bf16.xpose.msra.mxu0 0
        %906 = vmatprep.subr.bf16.mxu0 0
        %907 = vmatpush1.bf16.xpose.msra.mxu0 0
        %908 = vmatprep.subr.bf16.mxu0 0
        %909 = vmatpush1.bf16.xpose.msra.mxu0 0
        %910 = vmatprep.subr.bf16.mxu0 0
        %911 = vmatpush1.bf16.xpose.msra.mxu0 0
        %912 = vmatprep.subr.bf16.mxu0 0
        %913 = vmatpush1.bf16.xpose.msra.mxu0 0
        %914 = vmatprep.subr.bf16.mxu0 0
        %915 = vmatpush1.bf16.xpose.msra.mxu0 0
        %916 = vmatprep.subr.bf16.mxu0 0
        %917 = vmatpush1.bf16.xpose.msra.mxu0 0
        %918 = vmatprep.subr.bf16.mxu0 0
        %919 = vmatpush1.bf16.xpose.msra.mxu0 0
        %920 = vmatprep.subr.bf16.mxu0 0
        %921 = vmatpush1.bf16.xpose.msra.mxu0 0
        %922 = vmatprep.subr.bf16.mxu0 0
        %923 = vmatpush1.bf16.xpose.msra.mxu0 0
        %924 = vmatprep.subr.bf16.mxu0 0
        %925 = vmatpush1.bf16.xpose.msra.mxu0 0
        %926 = vmatprep.subr.bf16.mxu0 0
        %927 = vmatpush1.bf16.xpose.msra.mxu0 0
        %928 = vmatprep.subr.bf16.mxu0 0
        %929 = vmatpush1.bf16.xpose.msra.mxu0 0
        %930 = vmatprep.subr.bf16.mxu0 0
        %931 = vmatpush1.bf16.xpose.msra.mxu0 0
        %932 = vmatprep.mubr.bf16.mxu0 0
        %933 = vmatmul.mubr.bf16.gmra.mrb[0].mxu0 %v895
        %v934 = vpop.f32.mrb[0].mxu0
        %v935 = vadd.f32 0.0, %v934
        %v936 = vpop.f32.mrb[0].mxu0
        %v937 = vpop.f32.mrb[0].mxu0
        %v938 = vpop.f32.mrb[0].mxu0
        %939 = vdwg.mxu0
        %940 = vrot.lane.b32.xlu0 %v890, 96
        %v941 = vpop.permute.xlu0 %940
        %v943 = vsel %vm893, %v890, 0
        %v946 = vsel %vm893, %v941, 0
        %948 = vmatprep.subr.bf16.mxu0 0
        %949 = vmatpush1.bf16.xpose.msra.mxu0 %v946
        %950 = vmatprep.subr.bf16.mxu0 0
        %951 = vmatpush1.bf16.xpose.msra.mxu0 0
        %952 = vmatprep.subr.bf16.mxu0 0
        %953 = vmatpush1.bf16.xpose.msra.mxu0 0
        %954 = vmatprep.subr.bf16.mxu0 0
        %955 = vmatpush1.bf16.xpose.msra.mxu0 0
        %956 = vmatprep.subr.bf16.mxu0 0
        %957 = vmatpush1.bf16.xpose.msra.mxu0 0
        %958 = vmatprep.subr.bf16.mxu0 0
        %959 = vmatpush1.bf16.xpose.msra.mxu0 0
        %960 = vmatprep.subr.bf16.mxu0 0
        %961 = vmatpush1.bf16.xpose.msra.mxu0 0
        %962 = vmatprep.subr.bf16.mxu0 0
        %963 = vmatpush1.bf16.xpose.msra.mxu0 0
        %964 = vmatprep.subr.bf16.mxu0 0
        %965 = vmatpush1.bf16.xpose.msra.mxu0 0
        %966 = vmatprep.subr.bf16.mxu0 0
        %967 = vmatpush1.bf16.xpose.msra.mxu0 0
        %968 = vmatprep.subr.bf16.mxu0 0
        %969 = vmatpush1.bf16.xpose.msra.mxu0 0
        %970 = vmatprep.subr.bf16.mxu0 0
        %971 = vmatpush1.bf16.xpose.msra.mxu0 0
        %972 = vmatprep.subr.bf16.mxu0 0
        %973 = vmatpush1.bf16.xpose.msra.mxu0 0
        %974 = vmatprep.subr.bf16.mxu0 0
        %975 = vmatpush1.bf16.xpose.msra.mxu0 0
        %976 = vmatprep.subr.bf16.mxu0 0
        %977 = vmatpush1.bf16.xpose.msra.mxu0 0
        %978 = vmatprep.subr.bf16.mxu0 0
        %979 = vmatpush1.bf16.xpose.msra.mxu0 0
        %980 = vmatprep.mubr.bf16.mxu0 0
        %981 = vmatmul.mubr.bf16.gmra.mrb[0].mxu0 %v943
        %v982 = vpop.f32.mrb[0].mxu0
        %v983 = vadd.f32 0.0, %v982
        %v984 = vpop.f32.mrb[0].mxu0
        %v985 = vpop.f32.mrb[0].mxu0
        %v986 = vpop.f32.mrb[0].mxu0
        %987 = vdwg.mxu0
        %v988 = vsel %vm893, %v935, -inf
        %989 = vmax.xlane.f32.xlu0 %v988
        %v990 = vpop.xlane.xlu0 %989
        %v991 = vsel %vm893, %v983, -inf
        %992 = vmax.xlane.f32.xlu0 %v991
        %v993 = vpop.xlane.xlu0 %992
        %v994 = vsub.f32 %v935, %v990
        %v995 = vsub.f32 %v983, %v993
        %v996 = vmul.f32 %v994, 1.442695
        %v997 = vpow.pop %v996
        %v998 = vmul.f32 %v995, 1.442695
        %v999 = vpow.pop %v998
        %v1000 = vsel %vm893, %v997, 0.0
        %1001 = vadd.xlane.f32.xlu0 %v1000
        %v1002 = vpop.xlane.xlu0 %1001
        %v1003 = vsel %vm893, %v999, 0.0
        %1004 = vadd.xlane.f32.xlu0 %v1003
        %v1005 = vpop.xlane.xlu0 %1004
        %v1006 = vrcp.pop %v1002
        %v1007 = vmul.f32 %v997, %v1006
        %v1008 = vrcp.pop %v1005
        %v1009 = vmul.f32 %v999, %v1008
        %v1010 = vpack.c.bf16 %v1007, %v1007
        %v1011 = vpack.c.bf16 %v1009, %v1009
        %1012 = vrot.lane.b32.xlu0 %v889, 64
        %v1013 = vpop.permute.xlu0 %1012
        %v1015 = vsel %vm893, %v1010, 0
        %vm1017 = vcmask 1043456
        %v1019 = vsel %vm1017, %v1013, 0
        %1021 = vmatprep.subr.bf16.mxu0 0
        %1022 = vmatpush1.bf16.msra.mxu0 %v1019
        %1023 = vmatprep.subr.bf16.mxu0 0
        %1024 = vmatpush1.bf16.msra.mxu0 0
        %1025 = vmatprep.subr.bf16.mxu0 0
        %1026 = vmatpush1.bf16.msra.mxu0 0
        %1027 = vmatprep.subr.bf16.mxu0 0
        %1028 = vmatpush1.bf16.msra.mxu0 0
        %1029 = vmatprep.subr.bf16.mxu0 0
        %1030 = vmatpush1.bf16.msra.mxu0 0
        %1031 = vmatprep.subr.bf16.mxu0 0
        %1032 = vmatpush1.bf16.msra.mxu0 0
        %1033 = vmatprep.subr.bf16.mxu0 0
        %1034 = vmatpush1.bf16.msra.mxu0 0
        %1035 = vmatprep.subr.bf16.mxu0 0
        %1036 = vmatpush1.bf16.msra.mxu0 0
        %1037 = vmatprep.subr.bf16.mxu0 0
        %1038 = vmatpush1.bf16.msra.mxu0 0
        %1039 = vmatprep.subr.bf16.mxu0 0
        %1040 = vmatpush1.bf16.msra.mxu0 0
        %1041 = vmatprep.subr.bf16.mxu0 0
        %1042 = vmatpush1.bf16.msra.mxu0 0
        %1043 = vmatprep.subr.bf16.mxu0 0
        %1044 = vmatpush1.bf16.msra.mxu0 0
        %1045 = vmatprep.subr.bf16.mxu0 0
        %1046 = vmatpush1.bf16.msra.mxu0 0
        %1047 = vmatprep.subr.bf16.mxu0 0
        %1048 = vmatpush1.bf16.msra.mxu0 0
        %1049 = vmatprep.subr.bf16.mxu0 0
        %1050 = vmatpush1.bf16.msra.mxu0 0
        %1051 = vmatprep.subr.bf16.mxu0 0
        %1052 = vmatpush1.bf16.msra.mxu0 0
        %1053 = vmatprep.mubr.bf16.mxu0 0
        %1054 = vmatmul.mubr.bf16.gmra.mrb[0].mxu0 %v1015
        %v1055 = vpop.f32.mrb[0].mxu0
        %v1056 = vadd.f32 0.0, %v1055
        %v1057 = vpop.f32.mrb[0].mxu0
        %v1058 = vpop.f32.mrb[0].mxu0
        %v1059 = vpop.f32.mrb[0].mxu0
        %1060 = vdwg.mxu0
        %1061 = vrot.lane.b32.xlu0 %v890, 64
        %v1062 = vpop.permute.xlu0 %1061
        %v1064 = vsel %vm893, %v1011, 0
        %v1067 = vsel %vm1017, %v1062, 0
        %1069 = vmatprep.subr.bf16.mxu0 0
        %1070 = vmatpush1.bf16.msra.mxu0 %v1067
        %1071 = vmatprep.subr.bf16.mxu0 0
        %1072 = vmatpush1.bf16.msra.mxu0 0
        %1073 = vmatprep.subr.bf16.mxu0 0
        %1074 = vmatpush1.bf16.msra.mxu0 0
        %1075 = vmatprep.subr.bf16.mxu0 0
        %1076 = vmatpush1.bf16.msra.mxu0 0
        %1077 = vmatprep.subr.bf16.mxu0 0
        %1078 = vmatpush1.bf16.msra.mxu0 0
        %1079 = vmatprep.subr.bf16.mxu0 0
        %1080 = vmatpush1.bf16.msra.mxu0 0
        %1081 = vmatprep.subr.bf16.mxu0 0
        %1082 = vmatpush1.bf16.msra.mxu0 0
        %1083 = vmatprep.subr.bf16.mxu0 0
        %1084 = vmatpush1.bf16.msra.mxu0 0
        %1085 = vmatprep.subr.bf16.mxu0 0
        %1086 = vmatpush1.bf16.msra.mxu0 0
        %1087 = vmatprep.subr.bf16.mxu0 0
        %1088 = vmatpush1.bf16.msra.mxu0 0
        %1089 = vmatprep.subr.bf16.mxu0 0
        %1090 = vmatpush1.bf16.msra.mxu0 0
        %1091 = vmatprep.subr.bf16.mxu0 0
        %1092 = vmatpush1.bf16.msra.mxu0 0
        %1093 = vmatprep.subr.bf16.mxu0 0
        %1094 = vmatpush1.bf16.msra.mxu0 0
        %1095 = vmatprep.subr.bf16.mxu0 0
        %1096 = vmatpush1.bf16.msra.mxu0 0
        %1097 = vmatprep.subr.bf16.mxu0 0
        %1098 = vmatpush1.bf16.msra.mxu0 0
        %1099 = vmatprep.subr.bf16.mxu0 0
        %1100 = vmatpush1.bf16.msra.mxu0 0
        %1101 = vmatprep.mubr.bf16.mxu0 0
        %1102 = vmatmul.mubr.bf16.gmra.mrb[0].mxu0 %v1064
        %v1103 = vpop.f32.mrb[0].mxu0
        %v1104 = vadd.f32 0.0, %v1103
        %v1105 = vpop.f32.mrb[0].mxu0
        %v1106 = vpop.f32.mrb[0].mxu0
        %v1107 = vpop.f32.mrb[0].mxu0
        %1108 = vdwg.mxu0
        %1109 = vrot.lane.b32.xlu0 %v889, 120
        %v1110 = vpop.permute.xlu0 %1109
        %1111 = vrot.lane.b32.xlu0 %v889, 88
        %v1112 = vpop.permute.xlu0 %1111
        %v1114 = vsel %vm893, %v1110, 0
        %v1117 = vsel %vm893, %v1112, 0
        %1119 = vmatprep.subr.bf16.mxu0 0
        %1120 = vmatpush1.bf16.xpose.msra.mxu0 %v1117
        %1121 = vmatprep.subr.bf16.mxu0 0
        %1122 = vmatpush1.bf16.xpose.msra.mxu0 0
        %1123 = vmatprep.subr.bf16.mxu0 0
        %1124 = vmatpush1.bf16.xpose.msra.mxu0 0
        %1125 = vmatprep.subr.bf16.mxu0 0
        %1126 = vmatpush1.bf16.xpose.msra.mxu0 0
        %1127 = vmatprep.subr.bf16.mxu0 0
        %1128 = vmatpush1.bf16.xpose.msra.mxu0 0
        %1129 = vmatprep.subr.bf16.mxu0 0
        %1130 = vmatpush1.bf16.xpose.msra.mxu0 0
        %1131 = vmatprep.subr.bf16.mxu0 0
        %1132 = vmatpush1.bf16.xpose.msra.mxu0 0
        %1133 = vmatprep.subr.bf16.mxu0 0
        %1134 = vmatpush1.bf16.xpose.msra.mxu0 0
        %1135 = vmatprep.subr.bf16.mxu0 0
        %1136 = vmatpush1.bf16.xpose.msra.mxu0 0
        %1137 = vmatprep.subr.bf16.mxu0 0
        %1138 = vmatpush1.bf16.xpose.msra.mxu0 0
        %1139 = vmatprep.subr.bf16.mxu0 0
        %1140 = vmatpush1.bf16.xpose.msra.mxu0 0
        %1141 = vmatprep.subr.bf16.mxu0 0
        %1142 = vmatpush1.bf16.xpose.msra.mxu0 0
        %1143 = vmatprep.subr.bf16.mxu0 0
        %1144 = vmatpush1.bf16.xpose.msra.mxu0 0
        %1145 = vmatprep.subr.bf16.mxu0 0
        %1146 = vmatpush1.bf16.xpose.msra.mxu0 0
        %1147 = vmatprep.subr.bf16.mxu0 0
        %1148 = vmatpush1.bf16.xpose.msra.mxu0 0
        %1149 = vmatprep.subr.bf16.mxu0 0
        %1150 = vmatpush1.bf16.xpose.msra.mxu0 0
        %1151 = vmatprep.mubr.bf16.mxu0 0
        %1152 = vmatmul.mubr.bf16.gmra.mrb[0].mxu0 %v1114
        %v1153 = vpop.f32.mrb[0].mxu0
        %v1154 = vadd.f32 0.0, %v1153
        %v1155 = vpop.f32.mrb[0].mxu0
        %v1156 = vpop.f32.mrb[0].mxu0
        %v1157 = vpop.f32.mrb[0].mxu0
        %1158 = vdwg.mxu0
        %1159 = vrot.lane.b32.xlu0 %v890, 120
        %v1160 = vpop.permute.xlu0 %1159
        %1161 = vrot.lane.b32.xlu0 %v890, 88
        %v1162 = vpop.permute.xlu0 %1161
        %v1164 = vsel %vm893, %v1160, 0
        %v1167 = vsel %vm893, %v1162, 0
        %1169 = vmatprep.subr.bf16.mxu0 0
        %1170 = vmatpush1.bf16.xpose.msra.mxu0 %v1167
        %1171 = vmatprep.subr.bf16.mxu0 0
        %1172 = vmatpush1.bf16.xpose.msra.mxu0 0
        %1173 = vmatprep.subr.bf16.mxu0 0
        %1174 = vmatpush1.bf16.xpose.msra.mxu0 0
        %1175 = vmatprep.subr.bf16.mxu0 0
        %1176 = vmatpush1.bf16.xpose.msra.mxu0 0
        %1177 = vmatprep.subr.bf16.mxu0 0
        %1178 = vmatpush1.bf16.xpose.msra.mxu0 0
        %1179 = vmatprep.subr.bf16.mxu0 0
        %1180 = vmatpush1.bf16.xpose.msra.mxu0 0
        %1181 = vmatprep.subr.bf16.mxu0 0
        %1182 = vmatpush1.bf16.xpose.msra.mxu0 0
        %1183 = vmatprep.subr.bf16.mxu0 0
        %1184 = vmatpush1.bf16.xpose.msra.mxu0 0
        %1185 = vmatprep.subr.bf16.mxu0 0
        %1186 = vmatpush1.bf16.xpose.msra.mxu0 0
        %1187 = vmatprep.subr.bf16.mxu0 0
        %1188 = vmatpush1.bf16.xpose.msra.mxu0 0
        %1189 = vmatprep.subr.bf16.mxu0 0
        %1190 = vmatpush1.bf16.xpose.msra.mxu0 0
        %1191 = vmatprep.subr.bf16.mxu0 0
        %1192 = vmatpush1.bf16.xpose.msra.mxu0 0
        %1193 = vmatprep.subr.bf16.mxu0 0
        %1194 = vmatpush1.bf16.xpose.msra.mxu0 0
        %1195 = vmatprep.subr.bf16.mxu0 0
        %1196 = vmatpush1.bf16.xpose.msra.mxu0 0
        %1197 = vmatprep.subr.bf16.mxu0 0
        %1198 = vmatpush1.bf16.xpose.msra.mxu0 0
        %1199 = vmatprep.subr.bf16.mxu0 0
        %1200 = vmatpush1.bf16.xpose.msra.mxu0 0
        %1201 = vmatprep.mubr.bf16.mxu0 0
        %1202 = vmatmul.mubr.bf16.gmra.mrb[0].mxu0 %v1164
        %v1203 = vpop.f32.mrb[0].mxu0
        %v1204 = vadd.f32 0.0, %v1203
        %v1205 = vpop.f32.mrb[0].mxu0
        %v1206 = vpop.f32.mrb[0].mxu0
        %v1207 = vpop.f32.mrb[0].mxu0
        %1208 = vdwg.mxu0
        %v1209 = vsel %vm893, %v1154, -inf
        %1210 = vmax.xlane.f32.xlu0 %v1209
        %v1211 = vpop.xlane.xlu0 %1210
        %v1212 = vsel %vm893, %v1204, -inf
        %1213 = vmax.xlane.f32.xlu0 %v1212
        %v1214 = vpop.xlane.xlu0 %1213
        %v1215 = vsub.f32 %v1154, %v1211
        %v1216 = vsub.f32 %v1204, %v1214
        %v1217 = vmul.f32 %v1215, 1.442695
        %v1218 = vpow.pop %v1217
        %v1219 = vmul.f32 %v1216, 1.442695
        %v1220 = vpow.pop %v1219
        %v1221 = vsel %vm893, %v1218, 0.0
        %1222 = vadd.xlane.f32.xlu0 %v1221
        %v1223 = vpop.xlane.xlu0 %1222
        %v1224 = vsel %vm893, %v1220, 0.0
        %1225 = vadd.xlane.f32.xlu0 %v1224
        %v1226 = vpop.xlane.xlu0 %1225
        %v1227 = vrcp.pop %v1223
        %v1228 = vmul.f32 %v1218, %v1227
        %v1229 = vrcp.pop %v1226
        %v1230 = vmul.f32 %v1220, %v1229
        %v1231 = vpack.c.bf16 %v1228, %v1228
        %v1232 = vpack.c.bf16 %v1230, %v1230
        %1233 = vrot.lane.b32.xlu0 %v889, 56
        %v1234 = vpop.permute.xlu0 %1233
        %v1236 = vsel %vm893, %v1231, 0
        %v1239 = vsel %vm1017, %v1234, 0
        %1241 = vmatprep.subr.bf16.mxu0 0
        %1242 = vmatpush1.bf16.msra.mxu0 %v1239
        %1243 = vmatprep.subr.bf16.mxu0 0
        %1244 = vmatpush1.bf16.msra.mxu0 0
        %1245 = vmatprep.subr.bf16.mxu0 0
        %1246 = vmatpush1.bf16.msra.mxu0 0
        %1247 = vmatprep.subr.bf16.mxu0 0
        %1248 = vmatpush1.bf16.msra.mxu0 0
        %1249 = vmatprep.subr.bf16.mxu0 0
        %1250 = vmatpush1.bf16.msra.mxu0 0
        %1251 = vmatprep.subr.bf16.mxu0 0
        %1252 = vmatpush1.bf16.msra.mxu0 0
        %1253 = vmatprep.subr.bf16.mxu0 0
        %1254 = vmatpush1.bf16.msra.mxu0 0
        %1255 = vmatprep.subr.bf16.mxu0 0
        %1256 = vmatpush1.bf16.msra.mxu0 0
        %1257 = vmatprep.subr.bf16.mxu0 0
        %1258 = vmatpush1.bf16.msra.mxu0 0
        %1259 = vmatprep.subr.bf16.mxu0 0
        %1260 = vmatpush1.bf16.msra.mxu0 0
        %1261 = vmatprep.subr.bf16.mxu0 0
        %1262 = vmatpush1.bf16.msra.mxu0 0
        %1263 = vmatprep.subr.bf16.mxu0 0
        %1264 = vmatpush1.bf16.msra.mxu0 0
        %1265 = vmatprep.subr.bf16.mxu0 0
        %1266 = vmatpush1.bf16.msra.mxu0 0
        %1267 = vmatprep.subr.bf16.mxu0 0
        %1268 = vmatpush1.bf16.msra.mxu0 0
        %1269 = vmatprep.subr.bf16.mxu0 0
        %1270 = vmatpush1.bf16.msra.mxu0 0
        %1271 = vmatprep.subr.bf16.mxu0 0
        %1272 = vmatpush1.bf16.msra.mxu0 0
        %1273 = vmatprep.mubr.bf16.mxu0 0
        %1274 = vmatmul.mubr.bf16.gmra.mrb[0].mxu0 %v1236
        %v1275 = vpop.f32.mrb[0].mxu0
        %v1276 = vadd.f32 0.0, %v1275
        %v1277 = vpop.f32.mrb[0].mxu0
        %v1278 = vpop.f32.mrb[0].mxu0
        %v1279 = vpop.f32.mrb[0].mxu0
        %1280 = vdwg.mxu0
        %1281 = vrot.lane.b32.xlu0 %v890, 56
        %v1282 = vpop.permute.xlu0 %1281
        %v1284 = vsel %vm893, %v1232, 0
        %v1287 = vsel %vm1017, %v1282, 0
        %1289 = vmatprep.subr.bf16.mxu0 0
        %1290 = vmatpush1.bf16.msra.mxu0 %v1287
        %1291 = vmatprep.subr.bf16.mxu0 0
        %1292 = vmatpush1.bf16.msra.mxu0 0
        %1293 = vmatprep.subr.bf16.mxu0 0
        %1294 = vmatpush1.bf16.msra.mxu0 0
        %1295 = vmatprep.subr.bf16.mxu0 0
        %1296 = vmatpush1.bf16.msra.mxu0 0
        %1297 = vmatprep.subr.bf16.mxu0 0
        %1298 = vmatpush1.bf16.msra.mxu0 0
        %1299 = vmatprep.subr.bf16.mxu0 0
        %1300 = vmatpush1.bf16.msra.mxu0 0
        %1301 = vmatprep.subr.bf16.mxu0 0
        %1302 = vmatpush1.bf16.msra.mxu0 0
        %1303 = vmatprep.subr.bf16.mxu0 0
        %1304 = vmatpush1.bf16.msra.mxu0 0
        %1305 = vmatprep.subr.bf16.mxu0 0
        %1306 = vmatpush1.bf16.msra.mxu0 0
        %1307 = vmatprep.subr.bf16.mxu0 0
        %1308 = vmatpush1.bf16.msra.mxu0 0
        %1309 = vmatprep.subr.bf16.mxu0 0
        %1310 = vmatpush1.bf16.msra.mxu0 0
        %1311 = vmatprep.subr.bf16.mxu0 0
        %1312 = vmatpush1.bf16.msra.mxu0 0
        %1313 = vmatprep.subr.bf16.mxu0 0
        %1314 = vmatpush1.bf16.msra.mxu0 0
        %1315 = vmatprep.subr.bf16.mxu0 0
        %1316 = vmatpush1.bf16.msra.mxu0 0
        %1317 = vmatprep.subr.bf16.mxu0 0
        %1318 = vmatpush1.bf16.msra.mxu0 0
        %1319 = vmatprep.subr.bf16.mxu0 0
        %1320 = vmatpush1.bf16.msra.mxu0 0
        %1321 = vmatprep.mubr.bf16.mxu0 0
        %1322 = vmatmul.mubr.bf16.gmra.mrb[0].mxu0 %v1284
        %v1323 = vpop.f32.mrb[0].mxu0
        %v1324 = vadd.f32 0.0, %v1323
        %v1325 = vpop.f32.mrb[0].mxu0
        %v1326 = vpop.f32.mrb[0].mxu0
        %v1327 = vpop.f32.mrb[0].mxu0
        %1328 = vdwg.mxu0
        %1329 = vrot.lane.b32.xlu0 %v889, 112
        %v1330 = vpop.permute.xlu0 %1329
        %1331 = vrot.lane.b32.xlu0 %v889, 80
        %v1332 = vpop.permute.xlu0 %1331
        %v1334 = vsel %vm893, %v1330, 0
        %v1337 = vsel %vm893, %v1332, 0
        %1339 = vmatprep.subr.bf16.mxu0 0
        %1340 = vmatpush1.bf16.xpose.msra.mxu0 %v1337
        %1341 = vmatprep.subr.bf16.mxu0 0
        %1342 = vmatpush1.bf16.xpose.msra.mxu0 0
        %1343 = vmatprep.subr.bf16.mxu0 0
        %1344 = vmatpush1.bf16.xpose.msra.mxu0 0
        %1345 = vmatprep.subr.bf16.mxu0 0
        %1346 = vmatpush1.bf16.xpose.msra.mxu0 0
        %1347 = vmatprep.subr.bf16.mxu0 0
        %1348 = vmatpush1.bf16.xpose.msra.mxu0 0
        %1349 = vmatprep.subr.bf16.mxu0 0
        %1350 = vmatpush1.bf16.xpose.msra.mxu0 0
        %1351 = vmatprep.subr.bf16.mxu0 0
        %1352 = vmatpush1.bf16.xpose.msra.mxu0 0
        %1353 = vmatprep.subr.bf16.mxu0 0
        %1354 = vmatpush1.bf16.xpose.msra.mxu0 0
        %1355 = vmatprep.subr.bf16.mxu0 0
        %1356 = vmatpush1.bf16.xpose.msra.mxu0 0
        %1357 = vmatprep.subr.bf16.mxu0 0
        %1358 = vmatpush1.bf16.xpose.msra.mxu0 0
        %1359 = vmatprep.subr.bf16.mxu0 0
        %1360 = vmatpush1.bf16.xpose.msra.mxu0 0
        %1361 = vmatprep.subr.bf16.mxu0 0
        %1362 = vmatpush1.bf16.xpose.msra.mxu0 0
        %1363 = vmatprep.subr.bf16.mxu0 0
        %1364 = vmatpush1.bf16.xpose.msra.mxu0 0
        %1365 = vmatprep.subr.bf16.mxu0 0
        %1366 = vmatpush1.bf16.xpose.msra.mxu0 0
        %1367 = vmatprep.subr.bf16.mxu0 0
        %1368 = vmatpush1.bf16.xpose.msra.mxu0 0
        %1369 = vmatprep.subr.bf16.mxu0 0
        %1370 = vmatpush1.bf16.xpose.msra.mxu0 0
        %1371 = vmatprep.mubr.bf16.mxu0 0
        %1372 = vmatmul.mubr.bf16.gmra.mrb[0].mxu0 %v1334
        %v1373 = vpop.f32.mrb[0].mxu0
        %v1374 = vadd.f32 0.0, %v1373
        %v1375 = vpop.f32.mrb[0].mxu0
        %v1376 = vpop.f32.mrb[0].mxu0
        %v1377 = vpop.f32.mrb[0].mxu0
        %1378 = vdwg.mxu0
        %1379 = vrot.lane.b32.xlu0 %v890, 112
        %v1380 = vpop.permute.xlu0 %1379
        %1381 = vrot.lane.b32.xlu0 %v890, 80
        %v1382 = vpop.permute.xlu0 %1381
        %v1384 = vsel %vm893, %v1380, 0
        %v1387 = vsel %vm893, %v1382, 0
        %1389 = vmatprep.subr.bf16.mxu0 0
        %1390 = vmatpush1.bf16.xpose.msra.mxu0 %v1387
        %1391 = vmatprep.subr.bf16.mxu0 0
        %1392 = vmatpush1.bf16.xpose.msra.mxu0 0
        %1393 = vmatprep.subr.bf16.mxu0 0
        %1394 = vmatpush1.bf16.xpose.msra.mxu0 0
        %1395 = vmatprep.subr.bf16.mxu0 0
        %1396 = vmatpush1.bf16.xpose.msra.mxu0 0
        %1397 = vmatprep.subr.bf16.mxu0 0
        %1398 = vmatpush1.bf16.xpose.msra.mxu0 0
        %1399 = vmatprep.subr.bf16.mxu0 0
        %1400 = vmatpush1.bf16.xpose.msra.mxu0 0
        %1401 = vmatprep.subr.bf16.mxu0 0
        %1402 = vmatpush1.bf16.xpose.msra.mxu0 0
        %1403 = vmatprep.subr.bf16.mxu0 0
        %1404 = vmatpush1.bf16.xpose.msra.mxu0 0
        %1405 = vmatprep.subr.bf16.mxu0 0
        %1406 = vmatpush1.bf16.xpose.msra.mxu0 0
        %1407 = vmatprep.subr.bf16.mxu0 0
        %1408 = vmatpush1.bf16.xpose.msra.mxu0 0
        %1409 = vmatprep.subr.bf16.mxu0 0
        %1410 = vmatpush1.bf16.xpose.msra.mxu0 0
        %1411 = vmatprep.subr.bf16.mxu0 0
        %1412 = vmatpush1.bf16.xpose.msra.mxu0 0
        %1413 = vmatprep.subr.bf16.mxu0 0
        %1414 = vmatpush1.bf16.xpose.msra.mxu0 0
        %1415 = vmatprep.subr.bf16.mxu0 0
        %1416 = vmatpush1.bf16.xpose.msra.mxu0 0
        %1417 = vmatprep.subr.bf16.mxu0 0
        %1418 = vmatpush1.bf16.xpose.msra.mxu0 0
        %1419 = vmatprep.subr.bf16.mxu0 0
        %1420 = vmatpush1.bf16.xpose.msra.mxu0 0
        %1421 = vmatprep.mubr.bf16.mxu0 0
        %1422 = vmatmul.mubr.bf16.gmra.mrb[0].mxu0 %v1384
        %v1423 = vpop.f32.mrb[0].mxu0
        %v1424 = vadd.f32 0.0, %v1423
        %v1425 = vpop.f32.mrb[0].mxu0
        %v1426 = vpop.f32.mrb[0].mxu0
        %v1427 = vpop.f32.mrb[0].mxu0
        %1428 = vdwg.mxu0
        %v1429 = vsel %vm893, %v1374, -inf
        %1430 = vmax.xlane.f32.xlu0 %v1429
        %v1431 = vpop.xlane.xlu0 %1430
        %v1432 = vsel %vm893, %v1424, -inf
        %1433 = vmax.xlane.f32.xlu0 %v1432
        %v1434 = vpop.xlane.xlu0 %1433
        %v1435 = vsub.f32 %v1374, %v1431
        %v1436 = vsub.f32 %v1424, %v1434
        %v1437 = vmul.f32 %v1435, 1.442695
        %v1438 = vpow.pop %v1437
        %v1439 = vmul.f32 %v1436, 1.442695
        %v1440 = vpow.pop %v1439
        %v1441 = vsel %vm893, %v1438, 0.0
        %1442 = vadd.xlane.f32.xlu0 %v1441
        %v1443 = vpop.xlane.xlu0 %1442
        %v1444 = vsel %vm893, %v1440, 0.0
        %1445 = vadd.xlane.f32.xlu0 %v1444
        %v1446 = vpop.xlane.xlu0 %1445
        %v1447 = vrcp.pop %v1443
        %v1448 = vmul.f32 %v1438, %v1447
        %v1449 = vrcp.pop %v1446
        %v1450 = vmul.f32 %v1440, %v1449
        %v1451 = vpack.c.bf16 %v1448, %v1448
        %v1452 = vpack.c.bf16 %v1450, %v1450
        %1453 = vrot.lane.b32.xlu0 %v889, 48
        %v1454 = vpop.permute.xlu0 %1453
        %v1456 = vsel %vm893, %v1451, 0
        %v1459 = vsel %vm1017, %v1454, 0
        %1461 = vmatprep.subr.bf16.mxu0 0
        %1462 = vmatpush1.bf16.msra.mxu0 %v1459
        %1463 = vmatprep.subr.bf16.mxu0 0
        %1464 = vmatpush1.bf16.msra.mxu0 0
        %1465 = vmatprep.subr.bf16.mxu0 0
        %1466 = vmatpush1.bf16.msra.mxu0 0
        %1467 = vmatprep.subr.bf16.mxu0 0
        %1468 = vmatpush1.bf16.msra.mxu0 0
        %1469 = vmatprep.subr.bf16.mxu0 0
        %1470 = vmatpush1.bf16.msra.mxu0 0
        %1471 = vmatprep.subr.bf16.mxu0 0
        %1472 = vmatpush1.bf16.msra.mxu0 0
        %1473 = vmatprep.subr.bf16.mxu0 0
        %1474 = vmatpush1.bf16.msra.mxu0 0
        %1475 = vmatprep.subr.bf16.mxu0 0
        %1476 = vmatpush1.bf16.msra.mxu0 0
        %1477 = vmatprep.subr.bf16.mxu0 0
        %1478 = vmatpush1.bf16.msra.mxu0 0
        %1479 = vmatprep.subr.bf16.mxu0 0
        %1480 = vmatpush1.bf16.msra.mxu0 0
        %1481 = vmatprep.subr.bf16.mxu0 0
        %1482 = vmatpush1.bf16.msra.mxu0 0
        %1483 = vmatprep.subr.bf16.mxu0 0
        %1484 = vmatpush1.bf16.msra.mxu0 0
        %1485 = vmatprep.subr.bf16.mxu0 0
        %1486 = vmatpush1.bf16.msra.mxu0 0
        %1487 = vmatprep.subr.bf16.mxu0 0
        %1488 = vmatpush1.bf16.msra.mxu0 0
        %1489 = vmatprep.subr.bf16.mxu0 0
        %1490 = vmatpush1.bf16.msra.mxu0 0
        %1491 = vmatprep.subr.bf16.mxu0 0
        %1492 = vmatpush1.bf16.msra.mxu0 0
        %1493 = vmatprep.mubr.bf16.mxu0 0
        %1494 = vmatmul.mubr.bf16.gmra.mrb[0].mxu0 %v1456
        %v1495 = vpop.f32.mrb[0].mxu0
        %v1496 = vadd.f32 0.0, %v1495
        %v1497 = vpop.f32.mrb[0].mxu0
        %v1498 = vpop.f32.mrb[0].mxu0
        %v1499 = vpop.f32.mrb[0].mxu0
        %1500 = vdwg.mxu0
        %1501 = vrot.lane.b32.xlu0 %v890, 48
        %v1502 = vpop.permute.xlu0 %1501
        %v1504 = vsel %vm893, %v1452, 0
        %v1507 = vsel %vm1017, %v1502, 0
        %1509 = vmatprep.subr.bf16.mxu0 0
        %1510 = vmatpush1.bf16.msra.mxu0 %v1507
        %1511 = vmatprep.subr.bf16.mxu0 0
        %1512 = vmatpush1.bf16.msra.mxu0 0
        %1513 = vmatprep.subr.bf16.mxu0 0
        %1514 = vmatpush1.bf16.msra.mxu0 0
        %1515 = vmatprep.subr.bf16.mxu0 0
        %1516 = vmatpush1.bf16.msra.mxu0 0
        %1517 = vmatprep.subr.bf16.mxu0 0
        %1518 = vmatpush1.bf16.msra.mxu0 0
        %1519 = vmatprep.subr.bf16.mxu0 0
        %1520 = vmatpush1.bf16.msra.mxu0 0
        %1521 = vmatprep.subr.bf16.mxu0 0
        %1522 = vmatpush1.bf16.msra.mxu0 0
        %1523 = vmatprep.subr.bf16.mxu0 0
        %1524 = vmatpush1.bf16.msra.mxu0 0
        %1525 = vmatprep.subr.bf16.mxu0 0
        %1526 = vmatpush1.bf16.msra.mxu0 0
        %1527 = vmatprep.subr.bf16.mxu0 0
        %1528 = vmatpush1.bf16.msra.mxu0 0
        %1529 = vmatprep.subr.bf16.mxu0 0
        %1530 = vmatpush1.bf16.msra.mxu0 0
        %1531 = vmatprep.subr.bf16.mxu0 0
        %1532 = vmatpush1.bf16.msra.mxu0 0
        %1533 = vmatprep.subr.bf16.mxu0 0
        %1534 = vmatpush1.bf16.msra.mxu0 0
        %1535 = vmatprep.subr.bf16.mxu0 0
        %1536 = vmatpush1.bf16.msra.mxu0 0
        %1537 = vmatprep.subr.bf16.mxu0 0
        %1538 = vmatpush1.bf16.msra.mxu0 0
        %1539 = vmatprep.subr.bf16.mxu0 0
        %1540 = vmatpush1.bf16.msra.mxu0 0
        %1541 = vmatprep.mubr.bf16.mxu0 0
        %1542 = vmatmul.mubr.bf16.gmra.mrb[0].mxu0 %v1504
        %v1543 = vpop.f32.mrb[0].mxu0
        %v1544 = vadd.f32 0.0, %v1543
        %v1545 = vpop.f32.mrb[0].mxu0
        %v1546 = vpop.f32.mrb[0].mxu0
        %v1547 = vpop.f32.mrb[0].mxu0
        %1548 = vdwg.mxu0
        %1549 = vrot.lane.b32.xlu0 %v889, 104
        %v1550 = vpop.permute.xlu0 %1549
        %1551 = vrot.lane.b32.xlu0 %v889, 72
        %v1552 = vpop.permute.xlu0 %1551
        %v1554 = vsel %vm893, %v1550, 0
        %v1557 = vsel %vm893, %v1552, 0
        %1559 = vmatprep.subr.bf16.mxu0 0
        %1560 = vmatpush1.bf16.xpose.msra.mxu0 %v1557
        %1561 = vmatprep.subr.bf16.mxu0 0
        %1562 = vmatpush1.bf16.xpose.msra.mxu0 0
        %1563 = vmatprep.subr.bf16.mxu0 0
        %1564 = vmatpush1.bf16.xpose.msra.mxu0 0
        %1565 = vmatprep.subr.bf16.mxu0 0
        %1566 = vmatpush1.bf16.xpose.msra.mxu0 0
        %1567 = vmatprep.subr.bf16.mxu0 0
        %1568 = vmatpush1.bf16.xpose.msra.mxu0 0
        %1569 = vmatprep.subr.bf16.mxu0 0
        %1570 = vmatpush1.bf16.xpose.msra.mxu0 0
        %1571 = vmatprep.subr.bf16.mxu0 0
        %1572 = vmatpush1.bf16.xpose.msra.mxu0 0
        %1573 = vmatprep.subr.bf16.mxu0 0
        %1574 = vmatpush1.bf16.xpose.msra.mxu0 0
        %1575 = vmatprep.subr.bf16.mxu0 0
        %1576 = vmatpush1.bf16.xpose.msra.mxu0 0
        %1577 = vmatprep.subr.bf16.mxu0 0
        %1578 = vmatpush1.bf16.xpose.msra.mxu0 0
        %1579 = vmatprep.subr.bf16.mxu0 0
        %1580 = vmatpush1.bf16.xpose.msra.mxu0 0
        %1581 = vmatprep.subr.bf16.mxu0 0
        %1582 = vmatpush1.bf16.xpose.msra.mxu0 0
        %1583 = vmatprep.subr.bf16.mxu0 0
        %1584 = vmatpush1.bf16.xpose.msra.mxu0 0
        %1585 = vmatprep.subr.bf16.mxu0 0
        %1586 = vmatpush1.bf16.xpose.msra.mxu0 0
        %1587 = vmatprep.subr.bf16.mxu0 0
        %1588 = vmatpush1.bf16.xpose.msra.mxu0 0
        %1589 = vmatprep.subr.bf16.mxu0 0
        %1590 = vmatpush1.bf16.xpose.msra.mxu0 0
        %1591 = vmatprep.mubr.bf16.mxu0 0
        %1592 = vmatmul.mubr.bf16.gmra.mrb[0].mxu0 %v1554
        %v1593 = vpop.f32.mrb[0].mxu0
        %v1594 = vadd.f32 0.0, %v1593
        %v1595 = vpop.f32.mrb[0].mxu0
        %v1596 = vpop.f32.mrb[0].mxu0
        %v1597 = vpop.f32.mrb[0].mxu0
        %1598 = vdwg.mxu0
        %1599 = vrot.lane.b32.xlu0 %v890, 104
        %v1600 = vpop.permute.xlu0 %1599
        %1601 = vrot.lane.b32.xlu0 %v890, 72
        %v1602 = vpop.permute.xlu0 %1601
        %v1604 = vsel %vm893, %v1600, 0
        %v1607 = vsel %vm893, %v1602, 0
        %1609 = vmatprep.subr.bf16.mxu0 0
        %1610 = vmatpush1.bf16.xpose.msra.mxu0 %v1607
        %1611 = vmatprep.subr.bf16.mxu0 0
        %1612 = vmatpush1.bf16.xpose.msra.mxu0 0
        %1613 = vmatprep.subr.bf16.mxu0 0
        %1614 = vmatpush1.bf16.xpose.msra.mxu0 0
        %1615 = vmatprep.subr.bf16.mxu0 0
        %1616 = vmatpush1.bf16.xpose.msra.mxu0 0
        %1617 = vmatprep.subr.bf16.mxu0 0
        %1618 = vmatpush1.bf16.xpose.msra.mxu0 0
        %1619 = vmatprep.subr.bf16.mxu0 0
        %1620 = vmatpush1.bf16.xpose.msra.mxu0 0
        %1621 = vmatprep.subr.bf16.mxu0 0
        %1622 = vmatpush1.bf16.xpose.msra.mxu0 0
        %1623 = vmatprep.subr.bf16.mxu0 0
        %1624 = vmatpush1.bf16.xpose.msra.mxu0 0
        %1625 = vmatprep.subr.bf16.mxu0 0
        %1626 = vmatpush1.bf16.xpose.msra.mxu0 0
        %1627 = vmatprep.subr.bf16.mxu0 0
        %1628 = vmatpush1.bf16.xpose.msra.mxu0 0
        %1629 = vmatprep.subr.bf16.mxu0 0
        %1630 = vmatpush1.bf16.xpose.msra.mxu0 0
        %1631 = vmatprep.subr.bf16.mxu0 0
        %1632 = vmatpush1.bf16.xpose.msra.mxu0 0
        %1633 = vmatprep.subr.bf16.mxu0 0
        %1634 = vmatpush1.bf16.xpose.msra.mxu0 0
        %1635 = vmatprep.subr.bf16.mxu0 0
        %1636 = vmatpush1.bf16.xpose.msra.mxu0 0
        %1637 = vmatprep.subr.bf16.mxu0 0
        %1638 = vmatpush1.bf16.xpose.msra.mxu0 0
        %1639 = vmatprep.subr.bf16.mxu0 0
        %1640 = vmatpush1.bf16.xpose.msra.mxu0 0
        %1641 = vmatprep.mubr.bf16.mxu0 0
        %1642 = vmatmul.mubr.bf16.gmra.mrb[0].mxu0 %v1604
        %v1643 = vpop.f32.mrb[0].mxu0
        %v1644 = vadd.f32 0.0, %v1643
        %v1645 = vpop.f32.mrb[0].mxu0
        %v1646 = vpop.f32.mrb[0].mxu0
        %v1647 = vpop.f32.mrb[0].mxu0
        %1648 = vdwg.mxu0
        %v1649 = vsel %vm893, %v1594, -inf
        %1650 = vmax.xlane.f32.xlu0 %v1649
        %v1651 = vpop.xlane.xlu0 %1650
        %v1652 = vsel %vm893, %v1644, -inf
        %1653 = vmax.xlane.f32.xlu0 %v1652
        %v1654 = vpop.xlane.xlu0 %1653
        %v1655 = vsub.f32 %v1594, %v1651
        %v1656 = vsub.f32 %v1644, %v1654
        %v1657 = vmul.f32 %v1655, 1.442695
        %v1658 = vpow.pop %v1657
        %v1659 = vmul.f32 %v1656, 1.442695
        %v1660 = vpow.pop %v1659
        %v1661 = vsel %vm893, %v1658, 0.0
        %1662 = vadd.xlane.f32.xlu0 %v1661
        %v1663 = vpop.xlane.xlu0 %1662
        %v1664 = vsel %vm893, %v1660, 0.0
        %1665 = vadd.xlane.f32.xlu0 %v1664
        %v1666 = vpop.xlane.xlu0 %1665
        %v1667 = vrcp.pop %v1663
        %v1668 = vmul.f32 %v1658, %v1667
        %v1669 = vrcp.pop %v1666
        %v1670 = vmul.f32 %v1660, %v1669
        %v1671 = vpack.c.bf16 %v1668, %v1668
        %v1672 = vpack.c.bf16 %v1670, %v1670
        %1673 = vrot.lane.b32.xlu0 %v889, 40
        %v1674 = vpop.permute.xlu0 %1673
        %v1676 = vsel %vm893, %v1671, 0
        %v1679 = vsel %vm1017, %v1674, 0
        %1681 = vmatprep.subr.bf16.mxu0 0
        %1682 = vmatpush1.bf16.msra.mxu0 %v1679
        %1683 = vmatprep.subr.bf16.mxu0 0
        %1684 = vmatpush1.bf16.msra.mxu0 0
        %1685 = vmatprep.subr.bf16.mxu0 0
        %1686 = vmatpush1.bf16.msra.mxu0 0
        %1687 = vmatprep.subr.bf16.mxu0 0
        %1688 = vmatpush1.bf16.msra.mxu0 0
        %1689 = vmatprep.subr.bf16.mxu0 0
        %1690 = vmatpush1.bf16.msra.mxu0 0
        %1691 = vmatprep.subr.bf16.mxu0 0
        %1692 = vmatpush1.bf16.msra.mxu0 0
        %1693 = vmatprep.subr.bf16.mxu0 0
        %1694 = vmatpush1.bf16.msra.mxu0 0
        %1695 = vmatprep.subr.bf16.mxu0 0
        %1696 = vmatpush1.bf16.msra.mxu0 0
        %1697 = vmatprep.subr.bf16.mxu0 0
        %1698 = vmatpush1.bf16.msra.mxu0 0
        %1699 = vmatprep.subr.bf16.mxu0 0
        %1700 = vmatpush1.bf16.msra.mxu0 0
        %1701 = vmatprep.subr.bf16.mxu0 0
        %1702 = vmatpush1.bf16.msra.mxu0 0
        %1703 = vmatprep.subr.bf16.mxu0 0
        %1704 = vmatpush1.bf16.msra.mxu0 0
        %1705 = vmatprep.subr.bf16.mxu0 0
        %1706 = vmatpush1.bf16.msra.mxu0 0
        %1707 = vmatprep.subr.bf16.mxu0 0
        %1708 = vmatpush1.bf16.msra.mxu0 0
        %1709 = vmatprep.subr.bf16.mxu0 0
        %1710 = vmatpush1.bf16.msra.mxu0 0
        %1711 = vmatprep.subr.bf16.mxu0 0
        %1712 = vmatpush1.bf16.msra.mxu0 0
        %1713 = vmatprep.mubr.bf16.mxu0 0
        %1714 = vmatmul.mubr.bf16.gmra.mrb[0].mxu0 %v1676
        %v1715 = vpop.f32.mrb[0].mxu0
        %v1716 = vadd.f32 0.0, %v1715
        %v1717 = vpop.f32.mrb[0].mxu0
        %v1718 = vpop.f32.mrb[0].mxu0
        %v1719 = vpop.f32.mrb[0].mxu0
        %1720 = vdwg.mxu0
        %1721 = vrot.lane.b32.xlu0 %v890, 40
        %v1722 = vpop.permute.xlu0 %1721
        %v1724 = vsel %vm893, %v1672, 0
        %v1727 = vsel %vm1017, %v1722, 0
        %1729 = vmatprep.subr.bf16.mxu0 0
        %1730 = vmatpush1.bf16.msra.mxu0 %v1727
        %1731 = vmatprep.subr.bf16.mxu0 0
        %1732 = vmatpush1.bf16.msra.mxu0 0
        %1733 = vmatprep.subr.bf16.mxu0 0
        %1734 = vmatpush1.bf16.msra.mxu0 0
        %1735 = vmatprep.subr.bf16.mxu0 0
        %1736 = vmatpush1.bf16.msra.mxu0 0
        %1737 = vmatprep.subr.bf16.mxu0 0
        %1738 = vmatpush1.bf16.msra.mxu0 0
        %1739 = vmatprep.subr.bf16.mxu0 0
        %1740 = vmatpush1.bf16.msra.mxu0 0
        %1741 = vmatprep.subr.bf16.mxu0 0
        %1742 = vmatpush1.bf16.msra.mxu0 0
        %1743 = vmatprep.subr.bf16.mxu0 0
        %1744 = vmatpush1.bf16.msra.mxu0 0
        %1745 = vmatprep.subr.bf16.mxu0 0
        %1746 = vmatpush1.bf16.msra.mxu0 0
        %1747 = vmatprep.subr.bf16.mxu0 0
        %1748 = vmatpush1.bf16.msra.mxu0 0
        %1749 = vmatprep.subr.bf16.mxu0 0
        %1750 = vmatpush1.bf16.msra.mxu0 0
        %1751 = vmatprep.subr.bf16.mxu0 0
        %1752 = vmatpush1.bf16.msra.mxu0 0
        %1753 = vmatprep.subr.bf16.mxu0 0
        %1754 = vmatpush1.bf16.msra.mxu0 0
        %1755 = vmatprep.subr.bf16.mxu0 0
        %1756 = vmatpush1.bf16.msra.mxu0 0
        %1757 = vmatprep.subr.bf16.mxu0 0
        %1758 = vmatpush1.bf16.msra.mxu0 0
        %1759 = vmatprep.subr.bf16.mxu0 0
        %1760 = vmatpush1.bf16.msra.mxu0 0
        %1761 = vmatprep.mubr.bf16.mxu0 0
        %1762 = vmatmul.mubr.bf16.gmra.mrb[0].mxu0 %v1724
        %v1763 = vpop.f32.mrb[0].mxu0
        %v1764 = vadd.f32 0.0, %v1763
        %v1765 = vpop.f32.mrb[0].mxu0
        %v1766 = vpop.f32.mrb[0].mxu0
        %v1767 = vpop.f32.mrb[0].mxu0
        %1768 = vdwg.mxu0
        %1771 = vrot.lane.b32.xlu0 %v1276, 8
        %v1772 = vpop.permute.xlu0 %1771
        %1773 = vrot.lane.b32.xlu0 %v1324, 8
        %v1774 = vpop.permute.xlu0 %1773
        %1779 = vrot.lane.b32.xlu0 %v1496, 16
        %v1780 = vpop.permute.xlu0 %1779
        %1781 = vrot.lane.b32.xlu0 %v1544, 16
        %v1782 = vpop.permute.xlu0 %1781
        %1787 = vrot.lane.b32.xlu0 %v1716, 24
        %v1788 = vpop.permute.xlu0 %1787
        %1789 = vrot.lane.b32.xlu0 %v1764, 24
        %v1790 = vpop.permute.xlu0 %1789
        %v1793 = vsel %vm893, %v1056, %v1772
        %v1794 = vsel %vm893, %v1104, %v1774
        %vm1795 = vcmask 130048
        %v1796 = vsel %vm1795, %v1793, %v1780
        %v1797 = vsel %vm1795, %v1794, %v1782
        %vm1798 = vcmask 195584
        %v1799 = vsel %vm1798, %v1796, %v1788
        %v1800 = vsel %vm1798, %v1797, %v1790
        %v1801 = vpack.c.bf16 %v1800, %v1799
        %v1802 = vld [vmem:[%s704] sm:$0xf]
        %v1803 = vld [vmem:[%s704 + $0x4] sm:$0xf]
        %v1804 = vld [vmem:[%s704 + $0x8] sm:$0xf]
        %v1805 = vld [vmem:[%s704 + $0xc] sm:$0xf]
        %v1806 = vld [vmem:[%s707] sm:$0x1]
        %v1808 = vlaneseq
        %v1809 = vshrl.u32 %v1808, 7
        %v1810 = vsub.s32 0, %v1809
        %v1811 = vrot.slane %v1806, %v1810
        %v1817 = vunpack.c.l.b16 %v1802
        %v1818 = vunpack.c.l.b16 %v1803
        %v1819 = vunpack.c.l.b16 %v1804
        %v1820 = vunpack.c.l.b16 %v1805
        %v1821 = vpack.c.b16 %v1818, %v1817
        %v1822 = vpack.c.b16 %v1820, %v1819
        %v1826 = vsel %vm840, %v1801, 0
        %1828 = vmatprep.subr.bf16.mxu0 0
        %1829 = vmatpush1.bf16.msra.mxu0 %v1821
        %1830 = vmatprep.subr.bf16.mxu0 0
        %1831 = vmatpush1.bf16.msra.mxu0 %v1822
        %1832 = vmatprep.subr.bf16.mxu0 0
        %1833 = vmatpush1.bf16.msra.mxu0 0
        %1834 = vmatprep.subr.bf16.mxu0 0
        %1835 = vmatpush1.bf16.msra.mxu0 0
        %1836 = vmatprep.subr.bf16.mxu0 0
        %1837 = vmatpush1.bf16.msra.mxu0 0
        %1838 = vmatprep.subr.bf16.mxu0 0
        %1839 = vmatpush1.bf16.msra.mxu0 0
        %1840 = vmatprep.subr.bf16.mxu0 0
        %1841 = vmatpush1.bf16.msra.mxu0 0
        %1842 = vmatprep.subr.bf16.mxu0 0
        %1843 = vmatpush1.bf16.msra.mxu0 0
        %1844 = vmatprep.subr.bf16.mxu0 0
        %1845 = vmatpush1.bf16.msra.mxu0 0
        %1846 = vmatprep.subr.bf16.mxu0 0
        %1847 = vmatpush1.bf16.msra.mxu0 0
        %1848 = vmatprep.subr.bf16.mxu0 0
        %1849 = vmatpush1.bf16.msra.mxu0 0
        %1850 = vmatprep.subr.bf16.mxu0 0
        %1851 = vmatpush1.bf16.msra.mxu0 0
        %1852 = vmatprep.subr.bf16.mxu0 0
        %1853 = vmatpush1.bf16.msra.mxu0 0
        %1854 = vmatprep.subr.bf16.mxu0 0
        %1855 = vmatpush1.bf16.msra.mxu0 0
        %1856 = vmatprep.subr.bf16.mxu0 0
        %1857 = vmatpush1.bf16.msra.mxu0 0
        %1858 = vmatprep.subr.bf16.mxu0 0
        %1859 = vmatpush1.bf16.msra.mxu0 0
        %1860 = vmatprep.mubr.bf16.mxu0 0
        %1861 = vmatmul.mubr.bf16.gmra.mrb[0].mxu0 %v1826
        %v1862 = vpop.f32.mrb[0].mxu0
        %v1863 = vadd.f32 %v1811, %v1862
        %v1864 = vpop.f32.mrb[0].mxu0
        %v1865 = vpop.f32.mrb[0].mxu0
        %v1866 = vadd.f32 %v1811, %v1865
        %v1867 = vpop.f32.mrb[0].mxu0
        %1868 = vdwg.mxu0
        %v1869 = vadd.f32 %v814, %v1863
        %v1870 = vadd.f32 %v815, %v1866
        %v1871 = vsel %vm840, %v1869, 0.0
        %1872 = vadd.xlane.f32.xlu0 %v1871
        %v1873 = vpop.xlane.xlu0 %1872
        %v1874 = vsel %vm840, %v1870, 0.0
        %1875 = vadd.xlane.f32.xlu0 %v1874
        %v1876 = vpop.xlane.xlu0 %1875
        %v1877 = vrcp.pop 32.0
        %v1878 = vmul.f32 %v1873, %v1877
        %v1879 = vmul.f32 %v1876, %v1877
        %v1880 = vsub.f32 %v1869, %v1878
        %v1881 = vsub.f32 %v1870, %v1879
        %v1882 = vmul.f32 %v1880, %v1880
        %v1883 = vmul.f32 %v1881, %v1881
        %v1884 = vsel %vm840, %v1882, 0.0
        %1885 = vadd.xlane.f32.xlu0 %v1884
        %v1886 = vpop.xlane.xlu0 %1885
        %v1887 = vsel %vm840, %v1883, 0.0
        %1888 = vadd.xlane.f32.xlu0 %v1887
        %v1889 = vpop.xlane.xlu0 %1888
        %v1890 = vmul.f32 %v1886, %v1877
        %v1891 = vmul.f32 %v1889, %v1877
        %v1892 = vadd.f32 %v1890, 1e-05
        %v1893 = vadd.f32 %v1891, 1e-05
        %v1894 = vrsqrt.pop %v1892
        %v1895 = vrsqrt.pop %v1893
        %v1896 = vmul.f32 %v1880, %v1894
        %v1897 = vmul.f32 %v1881, %v1895
        %v1898 = vld [vmem:[%s710] sm:$0x1]
        %v1900 = vlaneseq
        %v1901 = vshrl.u32 %v1900, 7
        %v1902 = vsub.s32 0, %v1901
        %v1903 = vrot.slane %v1898, %v1902
        %v1905 = vmul.f32 %v1896, %v1903
        %v1906 = vmul.f32 %v1897, %v1903
        %v1907 = vld [vmem:[%s713] sm:$0x1]
        %v1909 = vlaneseq
        %v1910 = vshrl.u32 %v1909, 7
        %v1911 = vsub.s32 0, %v1910
        %v1912 = vrot.slane %v1907, %v1911
        %v1914 = vadd.f32 %v1905, %v1912
        %v1915 = vadd.f32 %v1906, %v1912
        %v1916 = vpack.c.bf16 %v1915, %v1914
        %v1917 = vld [vmem:[%s718] sm:$0xf]
        %v1918 = vld [vmem:[%s718 + $0x4] sm:$0xf]
        %v1919 = vld [vmem:[%s718 + $0x8] sm:$0xf]
        %v1920 = vld [vmem:[%s718 + $0xc] sm:$0xf]
        %v1921 = vld [vmem:[%s721] sm:$0x1]
        %v1923 = vlaneseq
        %v1924 = vshrl.u32 %v1923, 7
        %v1925 = vsub.s32 0, %v1924
        %v1926 = vrot.slane %v1921, %v1925
        %v1932 = vunpack.c.l.b16 %v1917
        %v1933 = vunpack.c.l.b16 %v1918
        %v1934 = vunpack.c.l.b16 %v1919
        %v1935 = vunpack.c.l.b16 %v1920
        %v1936 = vpack.c.b16 %v1933, %v1932
        %v1937 = vpack.c.b16 %v1935, %v1934
        %v1941 = vsel %vm840, %v1916, 0
        %1943 = vmatprep.subr.bf16.mxu0 0
        %1944 = vmatpush1.bf16.msra.mxu0 %v1936
        %1945 = vmatprep.subr.bf16.mxu0 0
        %1946 = vmatpush1.bf16.msra.mxu0 %v1937
        %1947 = vmatprep.subr.bf16.mxu0 0
        %1948 = vmatpush1.bf16.msra.mxu0 0
        %1949 = vmatprep.subr.bf16.mxu0 0
        %1950 = vmatpush1.bf16.msra.mxu0 0
        %1951 = vmatprep.subr.bf16.mxu0 0
        %1952 = vmatpush1.bf16.msra.mxu0 0
        %1953 = vmatprep.subr.bf16.mxu0 0
        %1954 = vmatpush1.bf16.msra.mxu0 0
        %1955 = vmatprep.subr.bf16.mxu0 0
        %1956 = vmatpush1.bf16.msra.mxu0 0
        %1957 = vmatprep.subr.bf16.mxu0 0
        %1958 = vmatpush1.bf16.msra.mxu0 0
        %1959 = vmatprep.subr.bf16.mxu0 0
        %1960 = vmatpush1.bf16.msra.mxu0 0
        %1961 = vmatprep.subr.bf16.mxu0 0
        %1962 = vmatpush1.bf16.msra.mxu0 0
        %1963 = vmatprep.subr.bf16.mxu0 0
        %1964 = vmatpush1.bf16.msra.mxu0 0
        %1965 = vmatprep.subr.bf16.mxu0 0
        %1966 = vmatpush1.bf16.msra.mxu0 0
        %1967 = vmatprep.subr.bf16.mxu0 0
        %1968 = vmatpush1.bf16.msra.mxu0 0
        %1969 = vmatprep.subr.bf16.mxu0 0
        %1970 = vmatpush1.bf16.msra.mxu0 0
        %1971 = vmatprep.subr.bf16.mxu0 0
        %1972 = vmatpush1.bf16.msra.mxu0 0
        %1973 = vmatprep.subr.bf16.mxu0 0
        %1974 = vmatpush1.bf16.msra.mxu0 0
        %1975 = vmatprep.mubr.bf16.mxu0 0
        %1976 = vmatmul.mubr.bf16.gmra.mrb[0].mxu0 %v1941
        %v1977 = vpop.f32.mrb[0].mxu0
        %v1978 = vadd.f32 %v1926, %v1977
        %v1979 = vpop.f32.mrb[0].mxu0
        %v1980 = vpop.f32.mrb[0].mxu0
        %v1981 = vadd.f32 %v1926, %v1980
        %v1982 = vpop.f32.mrb[0].mxu0
        %1983 = vdwg.mxu0
        %v1984 = vmax.f32 %v1978, 0.0
        %v1985 = vmax.f32 %v1981, 0.0
        %v1986 = vpack.c.bf16 %v1985, %v1984
        %v1987 = vld [vmem:[%s726] sm:$0xf]
        %v1988 = vld [vmem:[%s726 + $0x4] sm:$0xf]
        %v1989 = vld [vmem:[%s726 + $0x8] sm:$0xf]
        %v1990 = vld [vmem:[%s726 + $0xc] sm:$0xf]
        %v1991 = vld [vmem:[%s726 + $0x10] sm:$0xf]
        %v1992 = vld [vmem:[%s726 + $0x14] sm:$0xf]
        %v1993 = vld [vmem:[%s726 + $0x18] sm:$0xf]
        %v1994 = vld [vmem:[%s726 + $0x1c] sm:$0xf]
        %v1995 = vld [vmem:[%s726 + $0x20] sm:$0xf]
        %v1996 = vld [vmem:[%s726 + $0x24] sm:$0xf]
        %v1997 = vld [vmem:[%s726 + $0x28] sm:$0xf]
        %v1998 = vld [vmem:[%s726 + $0x2c] sm:$0xf]
        %v1999 = vld [vmem:[%s726 + $0x30] sm:$0xf]
        %v2000 = vld [vmem:[%s726 + $0x34] sm:$0xf]
        %v2001 = vld [vmem:[%s726 + $0x38] sm:$0xf]
        %v2002 = vld [vmem:[%s726 + $0x3c] sm:$0xf]
        %v2003 = vld [vmem:[%s729] sm:$0x1]
        %v2005 = vlaneseq
        %v2006 = vshrl.u32 %v2005, 7
        %v2007 = vsub.s32 0, %v2006
        %v2008 = vrot.slane %v2003, %v2007
        %v2026 = vunpack.c.l.b16 %v1987
        %v2027 = vunpack.c.l.b16 %v1988
        %v2028 = vunpack.c.l.b16 %v1989
        %v2029 = vunpack.c.l.b16 %v1990
        %v2030 = vunpack.c.l.b16 %v1991
        %v2031 = vunpack.c.l.b16 %v1992
        %v2032 = vunpack.c.l.b16 %v1993
        %v2033 = vunpack.c.l.b16 %v1994
        %v2034 = vunpack.c.l.b16 %v1995
        %v2035 = vunpack.c.l.b16 %v1996
        %v2036 = vunpack.c.l.b16 %v1997
        %v2037 = vunpack.c.l.b16 %v1998
        %v2038 = vunpack.c.l.b16 %v1999
        %v2039 = vunpack.c.l.b16 %v2000
        %v2040 = vunpack.c.l.b16 %v2001
        %v2041 = vunpack.c.l.b16 %v2002
        %v2042 = vpack.c.b16 %v2027, %v2026
        %v2043 = vpack.c.b16 %v2029, %v2028
        %v2044 = vpack.c.b16 %v2031, %v2030
        %v2045 = vpack.c.b16 %v2033, %v2032
        %v2046 = vpack.c.b16 %v2035, %v2034
        %v2047 = vpack.c.b16 %v2037, %v2036
        %v2048 = vpack.c.b16 %v2039, %v2038
        %v2049 = vpack.c.b16 %v2041, %v2040
        %2058 = vmatprep.subr.bf16.mxu0 0
        %2059 = vmatpush1.bf16.msra.mxu0 %v2042
        %2060 = vmatprep.subr.bf16.mxu0 0
        %2061 = vmatpush1.bf16.msra.mxu0 %v2043
        %2062 = vmatprep.subr.bf16.mxu0 0
        %2063 = vmatpush1.bf16.msra.mxu0 %v2044
        %2064 = vmatprep.subr.bf16.mxu0 0
        %2065 = vmatpush1.bf16.msra.mxu0 %v2045
        %2066 = vmatprep.subr.bf16.mxu0 0
        %2067 = vmatpush1.bf16.msra.mxu0 %v2046
        %2068 = vmatprep.subr.bf16.mxu0 0
        %2069 = vmatpush1.bf16.msra.mxu0 %v2047
        %2070 = vmatprep.subr.bf16.mxu0 0
        %2071 = vmatpush1.bf16.msra.mxu0 %v2048
        %2072 = vmatprep.subr.bf16.mxu0 0
        %2073 = vmatpush1.bf16.msra.mxu0 %v2049
        %2074 = vmatprep.subr.bf16.mxu0 0
        %2075 = vmatpush1.bf16.msra.mxu0 0
        %2076 = vmatprep.subr.bf16.mxu0 0
        %2077 = vmatpush1.bf16.msra.mxu0 0
        %2078 = vmatprep.subr.bf16.mxu0 0
        %2079 = vmatpush1.bf16.msra.mxu0 0
        %2080 = vmatprep.subr.bf16.mxu0 0
        %2081 = vmatpush1.bf16.msra.mxu0 0
        %2082 = vmatprep.subr.bf16.mxu0 0
        %2083 = vmatpush1.bf16.msra.mxu0 0
        %2084 = vmatprep.subr.bf16.mxu0 0
        %2085 = vmatpush1.bf16.msra.mxu0 0
        %2086 = vmatprep.subr.bf16.mxu0 0
        %2087 = vmatpush1.bf16.msra.mxu0 0
        %2088 = vmatprep.subr.bf16.mxu0 0
        %2089 = vmatpush1.bf16.msra.mxu0 0
        %2090 = vmatprep.mubr.bf16.mxu0 0
        %2091 = vmatmul.mubr.bf16.gmra.mrb[0].mxu0 %v1986
        %v2092 = vpop.f32.mrb[0].mxu0
        %v2093 = vadd.f32 %v2008, %v2092
        %v2094 = vpop.f32.mrb[0].mxu0
        %v2095 = vpop.f32.mrb[0].mxu0
        %v2096 = vadd.f32 %v2008, %v2095
        %v2097 = vpop.f32.mrb[0].mxu0
        %2098 = vdwg.mxu0
        %v2099 = vadd.f32 %v1914, %v2093
        %v2100 = vadd.f32 %v1915, %v2096
        %v2101 = vsel %vm840, %v2099, 0.0
        %2102 = vadd.xlane.f32.xlu0 %v2101
        %v2103 = vpop.xlane.xlu0 %2102
        %v2104 = vsel %vm840, %v2100, 0.0
        %2105 = vadd.xlane.f32.xlu0 %v2104
        %v2106 = vpop.xlane.xlu0 %2105
        %v2107 = vmul.f32 %v2103, %v1877
        %v2108 = vmul.f32 %v2106, %v1877
        %v2109 = vsub.f32 %v2099, %v2107
        %v2110 = vsub.f32 %v2100, %v2108
        %v2111 = vmul.f32 %v2109, %v2109
        %v2112 = vmul.f32 %v2110, %v2110
        %v2113 = vsel %vm840, %v2111, 0.0
        %2114 = vadd.xlane.f32.xlu0 %v2113
        %v2115 = vpop.xlane.xlu0 %2114
        %v2116 = vsel %vm840, %v2112, 0.0
        %2117 = vadd.xlane.f32.xlu0 %v2116
        %v2118 = vpop.xlane.xlu0 %2117
        %v2119 = vmul.f32 %v2115, %v1877
        %v2120 = vmul.f32 %v2118, %v1877
        %v2121 = vadd.f32 %v2119, 1e-05
        %v2122 = vadd.f32 %v2120, 1e-05
        %v2123 = vrsqrt.pop %v2121
        %v2124 = vrsqrt.pop %v2122
        %v2125 = vmul.f32 %v2109, %v2123
        %v2126 = vmul.f32 %v2110, %v2124
        %v2127 = vld [vmem:[%s732] sm:$0x1]
        %v2129 = vlaneseq
        %v2130 = vshrl.u32 %v2129, 7
        %v2131 = vsub.s32 0, %v2130
        %v2132 = vrot.slane %v2127, %v2131
        %v2134 = vmul.f32 %v2125, %v2132
        %v2135 = vmul.f32 %v2126, %v2132
        %v2136 = vld [vmem:[%s735] sm:$0x1]
        %v2138 = vlaneseq
        %v2139 = vshrl.u32 %v2138, 7
        %v2140 = vsub.s32 0, %v2139
        %v2141 = vrot.slane %v2136, %v2140
        %v2143 = vadd.f32 %v2134, %v2141
        %v2144 = vadd.f32 %v2135, %v2141
        %2145 = vst.msk [vmem:[#allocation2] sm:$0xff] %vm840, %v2143
        %2146 = vst.msk [vmem:[#allocation2 + $0x8] sm:$0xff] %vm840, %v2144
        %p2147 = scmp.eq.s32.totalorder %s32, 1
        // Predicated region
        $region97: #{tpu_custom_call.1} parent=91 // pred_check
          %p2148 = pneg %p2147
        $region98: #{tpu_custom_call.1} parent=91 // pred_check_branch
          %2150 = sbr.rel (%p2148) target = $region100
        $region99: #{tpu_custom_call.1} parent=91 // pred_region
          %v2151 = vld [vmem:[%s16] sm:$0x1]
          %v2153 = vlaneseq
          %v2154 = vshrl.u32 %v2153, 7
          %v2155 = vsub.s32 0, %v2154
          %v2156 = vrot.slane %v2151, %v2155
          %v2158 = vmul.f32 %v2143, %v2156
          %v2159 = vmul.f32 %v2144, %v2156
          %v2162 = vrot.slane %v2159, 7
          %vm2165 = vcmask 261127
          %v2166 = vsel %vm2165, %v2158, 0.0
          %2167 = vadd.xlane.f32.xlu0 %v2166
          %v2168 = vpop.xlane.xlu0 %2167
          %vm2169 = vcmask 253952
          %v2170 = vsel %vm2169, %v2162, 0.0
          %2171 = vadd.xlane.f32.xlu0 %v2170
          %v2172 = vpop.xlane.xlu0 %2171
          %v2173 = vld [vmem:[#allocation3] sm:$0x1]
          %v2175 = vlaneseq
          %v2176 = vshrl.u32 %v2175, 7
          %v2177 = vsub.s32 0, %v2176
          %v2178 = vrot.slane %v2173, %v2177
          %v2180 = vadd.f32 %v2168, %v2178
          %v2181 = vadd.f32 %v2172, %v2178
          %2183 = vset.pattern.permute.xlu0 0
          %2184 = vperm.xlu0 %2183, %v2180
          %v2185 = vpop.permute.xlu0 %2184
          %2188 = vset.pattern.permute.xlu0 0
          %2189 = vperm.xlu0 %2188, %v2181
          %v2190 = vpop.permute.xlu0 %2189
          %2192 = vst [vmem:[#allocation4 - $0x7] sm:$0x80] %v2185
          %2193 = vst [vmem:[#allocation4 + $0x1] sm:$0x1] %v2190
        $region100: #{tpu_custom_call.1} parent=91 // pred_fallthru
          _
        // Predicated region
        $region101: #{tpu_custom_call.1} parent=91 // pred_check
          %p2194 = pneg %p483
        $region102: #{tpu_custom_call.1} parent=91 // pred_check_branch
          %2196 = sbr.rel (%p2194) target = $region104
        $region103: #{tpu_custom_call.1} parent=91 // pred_region
          %s2198 = ssub.s32 32, 32
          %2199 = vsyncadd [#allocation5], %s2198
          %s2201 = sshll.u32 [#allocation4], 4
          %s2202 = int_to_ptr.vmem [resolvable:$true] %s2201
          %2204 = dma.vmem_to_hbm [thread:$0]  %s2202, 32, %s18, [#allocation5]
        $region104: #{tpu_custom_call.1} parent=91 // pred_fallthru
          _
        // Predicated region
        $region105: #{tpu_custom_call.1} parent=91 // pred_check
          %p2205 = pneg %p483
        $region106: #{tpu_custom_call.1} parent=91 // pred_check_branch
          %2207 = sbr.rel (%p2205) target = $region108
        $region107: #{tpu_custom_call.1} parent=91 // pred_region
          %2208 = dma.done [#allocation5], 32
        $region108: #{tpu_custom_call.1} parent=91 // pred_fallthru
          _
      $region92: #{tpu_custom_call.1} parent=5 // pred_fallthru
        _
      %p2209 = scmp.le.s32.totalorder 2, %s27
      // Predicated region
      $region109: #{tpu_custom_call.1} parent=5 // pred_check
        %p2210 = pneg %p2209
      $region110: #{tpu_custom_call.1} parent=5 // pred_check_branch
        %2212 = sbr.rel (%p2210) target = $region112
      $region111: #{tpu_custom_call.1} parent=5 // pred_region
        %s2213 = ssub.s32 %s27, 2
      $region112: #{tpu_custom_call.1} parent=5 // pred_fallthru
        _
    $region6: #{tpu_custom_call.1} parent=1 // loop_footer
      %s31 = sadd.s32 1, %s27
    $region7: #{tpu_custom_call.1} parent=1 // loop_footer_branch
      %26 = sbr.rel target = $region3
    $region8: #{tpu_custom_call.1} parent=1 // loop_exit
      _
    %2214 = vsyncpa [#allocation5], 1
    %s2215 = scalar_lea.sflag [#allocation5], 1
    %2216 = vsyncpa %s2215, 1

</llo_original>
